<compile_context>
chip_gen: v7x
topology: tpu7x:2x2x1
jax: 0.10.0
libtpu: 0.0.40
codegen_flags: <defaults>
</compile_context>

<pallas_src>
import functools
import math

import jax
import jax.numpy as jnp
from jax.experimental import pallas as pl
from jax.experimental.pallas import tpu as pltpu

_GROUPS1 = 2   # conv1 groups (module spec)
_GROUPS2 = 3   # conv2 groups (module spec)


def _round_up(v, m):
    return (v + m - 1) // m * m


# --------------------------------------------------------------------------- #
# Pallas kernel: full BasicBlock forward for one batch element.
# --------------------------------------------------------------------------- #
def _basic_block_kernel(
    x_ref,       # (1, Cin', HW')  VMEM  input slab (f32)
    s1_ref,      # (Cin', 1)       VMEM  folded bn1 scale
    b1_ref,      # (Cin', 1)       VMEM  folded bn1 shift
    w1_ref,      # conv1 weight: (P', Cin') dense  or  (G1, P/G1, Cin/G1) grouped
    s2_ref,      # (P', 1)         VMEM  folded bn2 scale
    b2_ref,      # (P', 1)         VMEM  folded bn2 shift
    wy_ref,      # (P', NSy)       VMEM  ASL vertical blend weight per integer offset
    wx_ref,      # (P', NSx)       VMEM  ASL horizontal blend weight per integer offset
    my_ref,      # (NSy, HW')      VMEM  zero-pad validity masks (vertical)
    mx_ref,      # (NSx, HW')      VMEM  zero-pad validity masks (horizontal)
    w2_ref,      # conv2 weight: (P', P') dense  or  (G2, P/G2, P/G2) grouped
    *rest,       # [ws_ref] (P', Cin') if projection shortcut, then out_ref (1, P', HW')
    width, hw, offsets_y, offsets_x, grouped, has_shortcut_conv,
    matmul_dtype, blend_dtype,
):
    if has_shortcut_conv:
        ws_ref, out_ref = rest
    else:
        (out_ref,) = rest

    x = x_ref[0]                                                    # (Cin', HW')

    # bn1 (folded affine) + ReLU: broadcast FMA + max over the lane-dense slab (VPU).
    h1 = jnp.maximum(x * s1_ref[...] + b1_ref[...], 0.0)
    h1m = h1.astype(matmul_dtype)

    # conv1 (1x1, groups=2) on the MXU.  Per-group matmuls at production channel
    # counts (skips the 50% structural zeros of the block-diagonal form); dense
    # block-diagonal while per-group dims are below an MXU tile.
    if grouped:
        ci = h1m.shape[0] // _GROUPS1
        o1 = jnp.concatenate(
            [jnp.dot(w1_ref[g], h1m[g * ci:(g + 1) * ci, :],
                     preferred_element_type=jnp.float32)
             for g in range(_GROUPS1)], axis=0)
    else:
        o1 = jnp.dot(w1_ref[...], h1m, preferred_element_type=jnp.float32)

    # relu -> bn2 (module op order), then drop to blend_dtype (bf16 on v6e/v7x).
    h2 = (jnp.maximum(o1, 0.0) * s2_ref[...] + b2_ref[...]).astype(blend_dtype)

    # ActiveShiftLayer: per-channel bilinear shift with zero padding, decomposed as
    #   out = sum_d  wy[:, d] * (mask_d * roll(h2, d rows))        (vertical pass)
    # then the analogous horizontal pass.  Rolls are whole-slab lane rotations (XLU);
    # blends are broadcast FMAs (VPU).  VPU trims: first term initializes the
    # accumulator, offset-0 skips the all-ones mask, mul+add kept fusable as FMA.
    wy = wy_ref[...]
    my = my_ref[...]
    a = None
    for k, d in enumerate(offsets_y):
        src = h2 if d == 0 else pltpu.roll(h2, shift=(-d * width) % hw, axis=1)
        t = src if d == 0 else my[k:k + 1, :] * src
        term = wy[:, k:k + 1] * t
        a = term if a is None else a + term

    wx = wx_ref[...]
    mx = mx_ref[...]
    b = None
    for k, e in enumerate(offsets_x):
        src = a if e == 0 else pltpu.roll(a, shift=(-e) % hw, axis=1)
        t = src if e == 0 else mx[k:k + 1, :] * src
        term = wx[:, k:k + 1] * t
        b = term if b is None else b + term

    bm = b.astype(matmul_dtype)

    # conv2 (1x1, groups=3) on the MXU, residual expressed as accumulation into the
    # matmul result (lets v7x accumulate in the MRB), single lane-dense store.
    if grouped:
        pg = bm.shape[0] // _GROUPS2
        out = jnp.concatenate(
            [jnp.dot(w2_ref[g], bm[g * pg:(g + 1) * pg, :],
                     preferred_element_type=jnp.float32)
             for g in range(_GROUPS2)], axis=0)
    else:
        out = jnp.dot(w2_ref[...], bm, preferred_element_type=jnp.float32)

    if has_shortcut_conv:
        out = out + jnp.dot(ws_ref[...], x.astype(matmul_dtype),
                            preferred_element_type=jnp.float32)
    else:
        # Identity shortcut fast path: one VPU add, no MXU matmul, no ws buffer.
        out = out + x

    out_ref[0] = out.astype(out_ref.dtype)


# --------------------------------------------------------------------------- #
# Host-side helpers for the ASL roll+blend decomposition.
# --------------------------------------------------------------------------- #
def _asl_blend_weights(theta_1d, offsets):
    """Per-channel blend weight per integer offset d: (1-frac) at floor(theta),
    frac at floor(theta)+1."""
    lo = jnp.floor(theta_1d)
    frac = theta_1d - lo
    lo = lo.astype(jnp.int32)
    cols = [jnp.where(lo == d, 1.0 - frac, 0.0) + jnp.where(lo + 1 == d, frac, 0.0)
            for d in offsets]
    return jnp.stack(cols, axis=1).astype(jnp.float32)            # (P, NS)


def _shift_masks(offsets, h, w, axis):
    """Validity (zero-padding) masks on the flattened (H*W,) axis for shifts along
    rows (axis=0) or columns (axis=1)."""
    idx = jnp.arange(h * w, dtype=jnp.int32)
    pos = idx // w if axis == 0 else idx % w
    lim = h if axis == 0 else w
    return jnp.stack([((pos + d >= 0) & (pos + d < lim)).astype(jnp.float32)
                      for d in offsets])                          # (NS, HW)


# --------------------------------------------------------------------------- #
# Wrapper: pallas_call with a batch-parallel grid.
# --------------------------------------------------------------------------- #
def basic_block_forward(x, params, *, matmul_dtype=jnp.bfloat16,
                        blend_dtype=jnp.float32, shift_range=None,
                        group_matmul_min=128, single_buffer_constants=True,
                        vmem_limit_bytes=64 * 1024 * 1024):
    """Fused BasicBlock forward.

    matmul_dtype:  MXU input dtype (bf16 recommended on all gens; f32 accumulate).
    blend_dtype:   ASL blend dtype (bf16 recommended on v6e/v7x; keep f32 on v5e,
                   which has no bf16 VPU).  For v5e consider bf16 for the x/out
                   HBM-facing slabs instead (bandwidth-bound generation).
    shift_range:   optional static (lo, hi) integer floor-bounds covering theta;
                   pass it when calling under jit with traced theta (avoids the
                   host sync on jnp.min/max(theta)).
    """
    n, cin, h, w = x.shape
    p = params["w1"].shape[0]
    hw = h * w
    theta = params["theta"]
    has_shortcut_conv = params.get("ws", None) is not None

    # Lane / sublane padding: HW -> multiple of 128 (lane-dense stores), channels ->
    # multiple of 8 (full sublanes in every vreg / MXU row).
    hw_p = _round_up(hw, 128)
    cin_p = _round_up(cin, 8)
    p_p = _round_up(p, 8)

    # Static integer shift range per axis (kernel hyperparameter, not traced data).
    if shift_range is None:
        def _rng(t):
            return (int(math.floor(float(jnp.min(t)))),
                    int(math.floor(float(jnp.max(t)))))
        lo_y, hi_y = _rng(theta[:, 0])
        lo_x, hi_x = _rng(theta[:, 1])
    else:
        lo_y, hi_y = shift_range
        lo_x, hi_x = shift_range
    offsets_y = tuple(range(lo_y, hi_y + 2))
    offsets_x = tuple(range(lo_x, hi_x + 2))

    def pad2(a, rows, cols):
        return jnp.pad(a, ((0, rows - a.shape[0]), (0, cols - a.shape[1])))

    def colvec(v, rows):
        return pad2(v.astype(jnp.float32).reshape(-1, 1), rows, 1)

    wy = pad2(_asl_blend_weights(theta[:, 0], offsets_y),
              p_p, len(offsets_y)).astype(blend_dtype)
    wx = pad2(_asl_blend_weights(theta[:, 1], offsets_x),
              p_p, len(offsets_x)).astype(blend_dtype)
    my = pad2(_shift_masks(offsets_y, h, w, axis=0),
              len(offsets_y), hw_p).astype(blend_dtype)
    mx = pad2(_shift_masks(offsets_x, h, w, axis=1),
              len(offsets_x), hw_p).astype(blend_dtype)

    s1c, b1c = colvec(params["s1"], cin_p), colvec(params["b1"], cin_p)
    s2c, b2c = colvec(params["s2"], p_p), colvec(params["b2"], p_p)

    # Per-group matmuls once per-group dims reach an MXU tile; otherwise a single
    # dense block-diagonal matmul (the demo shapes take the dense path).
    grouped = (cin_p == cin and p_p == p and
               min(cin // _GROUPS1, p // _GROUPS1, p // _GROUPS2) >= group_matmul_min)
    if grouped:
        co1, ci1 = p // _GROUPS1, cin // _GROUPS1
        co2 = p // _GROUPS2
        w1m = jnp.stack([params["w1"][g * co1:(g + 1) * co1, g * ci1:(g + 1) * ci1]
                         for g in range(_GROUPS1)]).astype(matmul_dtype)
        w2m = jnp.stack([params["w2"][g * co2:(g + 1) * co2, g * co2:(g + 1) * co2]
                         for g in range(_GROUPS2)]).astype(matmul_dtype)
    else:
        w1m = pad2(params["w1"], p_p, cin_p).astype(matmul_dtype)
        w2m = pad2(params["w2"], p_p, p_p).astype(matmul_dtype)

    # Weights pre-cast to the MXU dtype once, host-side (no per-grid-step pack).
    x_pad = jnp.pad(x.reshape(n, cin, hw).astype(jnp.float32),
                    ((0, 0), (0, cin_p - cin), (0, hw_p - hw)))
    inputs = [x_pad, s1c, b1c, w1m, s2c, b2c, wy, wx, my, mx, w2m]
    if has_shortcut_conv:
        inputs.append(pad2(params["ws"], p_p, cin_p).astype(matmul_dtype))

    kernel = functools.partial(
        _basic_block_kernel,
        width=w, hw=hw_p, offsets_y=offsets_y, offsets_x=offsets_x,
        grouped=grouped, has_shortcut_conv=has_shortcut_conv,
        matmul_dtype=matmul_dtype, blend_dtype=blend_dtype)

    # Advisory cost estimate so XLA schedules the custom call sensibly in a graph.
    g1 = _GROUPS1 if grouped else 1
    g2 = _GROUPS2 if grouped else 1
    flops = 2 * n * hw_p * (p_p * cin_p // g1 + p_p * p_p // g2
                            + (p_p * cin_p if has_shortcut_conv else 0))
    bytes_accessed = (sum(int(a.size) * a.dtype.itemsize for a in inputs)
                      + n * p_p * hw_p * 4)
    cost = pl.CostEstimate(flops=int(flops), transcendentals=0,
                           bytes_accessed=int(bytes_accessed))

    def run(single_buffer):
        # Constants revisit the same block every grid step: single-buffer them so the
        # freed VMEM goes to activation tiles (matters against v7x's 64 MiB VMEM).
        if single_buffer:
            def const_spec(a):
                nd = a.ndim
                return pl.BlockSpec(a.shape, lambda i, _nd=nd: (0,) * _nd,
                                    pipeline_mode=pl.Buffered(1))
        else:
            def const_spec(a):
                nd = a.ndim
                return pl.BlockSpec(a.shape, lambda i, _nd=nd: (0,) * _nd)

        in_specs = [pl.BlockSpec((1, cin_p, hw_p), lambda i: (i, 0, 0))]
        in_specs += [const_spec(a) for a in inputs[1:]]

        grid_spec = pltpu.PrefetchScalarGridSpec(
            num_scalar_prefetch=0,
            grid=(n,),                 # batch-parallel; batch >= 2 keeps both v7x TCs busy
            in_specs=in_specs,
            out_specs=pl.BlockSpec((1, p_p, hw_p), lambda i: (i, 0, 0)),
        )
        return pl.pallas_call(
            kernel,
            out_shape=jax.ShapeDtypeStruct((n, p_p, hw_p), jnp.float32),
            grid_spec=grid_spec,
            cost_estimate=cost,
            compiler_params=pltpu.CompilerParams(
                dimension_semantics=("parallel",),
                vmem_limit_bytes=vmem_limit_bytes),
        )(*inputs)

    if single_buffer_constants:
        try:
            out_flat = run(True)
        except Exception:
            # pipeline_mode=pl.Buffered(1) not supported by this JAX/backend combo;
            # fall back to default double-buffering (correctness unaffected).
            out_flat = run(False)
    else:
        out_flat = run(False)

    return out_flat[:, :p, :hw].reshape(n, p, h, w)


# --------------------------------------------------------------------------- #
# Deterministic parameter construction (shapes dictated by __init__).
# --------------------------------------------------------------------------- #
def _grouped_dense(key, cout, cin, groups):
    """Dense (cout, cin) matrix equivalent to a grouped 1x1 conv weight (bias=False)."""
    assert cout % groups == 0 and cin % groups == 0
    co, ci = cout // groups, cin // groups
    blocks = jax.random.normal(key, (groups, co, ci), jnp.float32) / jnp.sqrt(float(ci))
    dense = jnp.zeros((cout, cin), jnp.float32)
    for g in range(groups):
        dense = dense.at[g * co:(g + 1) * co, g * ci:(g + 1) * ci].set(blocks[g])
    return dense


def _folded_bn(key, c, eps=1e-5):
    kg, kb, km, kv = jax.random.split(key, 4)
    gamma = 1.0 + 0.1 * jax.random.normal(kg, (c,), jnp.float32)
    beta = 0.1 * jax.random.normal(kb, (c,), jnp.float32)
    mean = 0.1 * jax.random.normal(km, (c,), jnp.float32)
    var = 1.0 + jax.random.uniform(kv, (c,), jnp.float32)
    scale = gamma * jax.lax.rsqrt(var + eps)
    return scale, beta - mean * scale


def _shift_matrix(shift, size):
    """Bilinear-shift operator (pure-JAX reference only): out[i] samples in at
    i+shift with zero padding outside [0, size)."""
    pos = jnp.arange(size, dtype=jnp.float32) + shift
    lo = jnp.floor(pos)
    frac = pos - lo
    lo = lo.astype(jnp.int32)
    j = jnp.arange(size, dtype=jnp.int32)[None, :]
    m_lo = (j == lo[:, None]).astype(jnp.float32)
    m_hi = (j == (lo + 1)[:, None]).astype(jnp.float32)
    return (1.0 - frac)[:, None] * m_lo + frac[:, None] * m_hi


def init_params(key, in_planes, planes, stride=1):
    assert stride == 1, "stride > 1 not implemented in this kernel"
    k = jax.random.split(key, 6)
    s1, b1 = _folded_bn(k[0], in_planes)
    s2, b2 = _folded_bn(k[1], planes)
    w1 = _grouped_dense(k[2], planes, in_planes, groups=_GROUPS1)
    w2 = _grouped_dense(k[3], planes, planes, groups=_GROUPS2)
    if stride != 1 or in_planes != planes:
        ws = jax.random.normal(k[4], (planes, in_planes), jnp.float32) / jnp.sqrt(
            float(in_planes))
    else:
        ws = None   # identity shortcut -> kernel takes the matmul-free fast path
    # ActiveShiftLayer learned per-channel (vertical, horizontal) shifts.
    theta = jax.random.uniform(k[5], (planes, 2), jnp.float32, minval=-1.0, maxval=1.0)
    return dict(s1=s1, b1=b1, w1=w1, s2=s2, b2=b2, w2=w2, ws=ws, theta=theta)


# Pure-JAX reference of the same forward (independent matrix-operator ASL path).
def reference_forward(x, p):
    _, _, h, w = x.shape
    planes = p["w1"].shape[0]
    sy = jnp.stack([_shift_matrix(p["theta"][c, 0], h) for c in range(planes)])
    sx = jnp.stack([_shift_matrix(p["theta"][c, 1], w) for c in range(planes)])
    h1 = jnp.maximum(x * p["s1"][None, :, None, None] + p["b1"][None, :, None, None], 0.0)
    o1 = jnp.einsum("pc,nchw->nphw", p["w1"], h1)
    h2 = jnp.maximum(o1, 0.0) * p["s2"][None, :, None, None] + p["b2"][None, :, None, None]
    a = jnp.einsum("phy,npyw->nphw", sy, h2)
    a = jnp.einsum("nphw,pxw->nphx", a, sx)
    o3 = jnp.einsum("qp,nphw->nqhw", p["w2"], a)
    sc = x if p["ws"] is None else jnp.einsum("qc,nchw->nqhw", p["ws"], x)
    return o3 + sc


if __name__ == "__main__":
    key = jax.random.PRNGKey(0)
    kx1, kp1, kx2, kp2 = jax.random.split(key, 4)
    N, H, W = 2, 16, 16

    # Case 1: projection shortcut (in_planes != planes) -> exercises the shortcut
    # matmul path.  bf16 MXU matmuls (default) => relative-error tolerance.
    x1 = jax.random.normal(kx1, (N, 4, H, W), jnp.float32)
    p1 = init_params(kp1, in_planes=4, planes=6)
    out1 = jax.block_until_ready(basic_block_forward(x1, p1))
    ref1 = reference_forward(x1, p1)
    assert out1.shape == (N, 6, H, W)
    rel1 = float(jnp.max(jnp.abs(out1 - ref1)) / (jnp.max(jnp.abs(ref1)) + 1e-6))
    assert rel1 < 3e-2, f"case 1 mismatch vs reference: rel_err={rel1}"

    # Case 2: identity shortcut (in_planes == planes) -> exercises the matmul-free
    # residual fast path and the bf16 ASL blend recommended for v6e/v7x.
    x2 = jax.random.normal(kx2, (N, 6, H, W), jnp.float32)
    p2 = init_params(kp2, in_planes=6, planes=6)
    out2 = jax.block_until_ready(
        basic_block_forward(x2, p2, blend_dtype=jnp.bfloat16))
    ref2 = reference_forward(x2, p2)
    assert out2.shape == (N, 6, H, W)
    rel2 = float(jnp.max(jnp.abs(out2 - ref2)) / (jnp.max(jnp.abs(ref2)) + 1e-6))
    assert rel2 < 5e-2, f"case 2 mismatch vs reference: rel_err={rel2}"

    print("KERNEL_OK")
</pallas_src>

<mosaic_0001>
module attributes {stable_mosaic.version = 11 : i64} {
  func.func @_basic_block_kernel(%arg0: i32, %arg1: memref<1x8x256xf32, #tpu.memory_space<vmem>>, %arg2: memref<8x1xf32, #tpu.memory_space<vmem>>, %arg3: memref<8x1xf32, #tpu.memory_space<vmem>>, %arg4: memref<8x8xbf16, #tpu.memory_space<vmem>>, %arg5: memref<8x1xf32, #tpu.memory_space<vmem>>, %arg6: memref<8x1xf32, #tpu.memory_space<vmem>>, %arg7: memref<8x3xf32, #tpu.memory_space<vmem>>, %arg8: memref<8x3xf32, #tpu.memory_space<vmem>>, %arg9: memref<3x256xf32, #tpu.memory_space<vmem>>, %arg10: memref<3x256xf32, #tpu.memory_space<vmem>>, %arg11: memref<8x8xbf16, #tpu.memory_space<vmem>>, %arg12: memref<8x8xbf16, #tpu.memory_space<vmem>>, %arg13: memref<1x8x256xf32, #tpu.memory_space<vmem>>) attributes {dimension_semantics = [#tpu.dimension_semantics<parallel>], iteration_bounds = array<i64: 2>, scalar_prefetch = 0 : i64, scratch_operands = 0 : i64, tpu.core_type = #tpu.core_type<tc>, window_params = [{transform_indices = @transform_0, window_bounds = array<i64: 1, 8, 256>}, {pipeline_mode = #tpu.pipeline_mode<synchronous>, transform_indices = @transform_1, window_bounds = array<i64: 8, 1>}, {pipeline_mode = #tpu.pipeline_mode<synchronous>, transform_indices = @transform_2, window_bounds = array<i64: 8, 1>}, {pipeline_mode = #tpu.pipeline_mode<synchronous>, transform_indices = @transform_3, window_bounds = array<i64: 8, 8>}, {pipeline_mode = #tpu.pipeline_mode<synchronous>, transform_indices = @transform_4, window_bounds = array<i64: 8, 1>}, {pipeline_mode = #tpu.pipeline_mode<synchronous>, transform_indices = @transform_5, window_bounds = array<i64: 8, 1>}, {pipeline_mode = #tpu.pipeline_mode<synchronous>, transform_indices = @transform_6, window_bounds = array<i64: 8, 3>}, {pipeline_mode = #tpu.pipeline_mode<synchronous>, transform_indices = @transform_7, window_bounds = array<i64: 8, 3>}, {pipeline_mode = #tpu.pipeline_mode<synchronous>, transform_indices = @transform_8, window_bounds = array<i64: 3, 256>}, {pipeline_mode = #tpu.pipeline_mode<synchronous>, transform_indices = @transform_9, window_bounds = array<i64: 3, 256>}, {pipeline_mode = #tpu.pipeline_mode<synchronous>, transform_indices = @transform_10, window_bounds = array<i64: 8, 8>}, {pipeline_mode = #tpu.pipeline_mode<synchronous>, transform_indices = @transform_11, window_bounds = array<i64: 8, 8>}, {transform_indices = @transform_12, window_bounds = array<i64: 1, 8, 256>}]} {
    %c0 = arith.constant 0 : index
    %c0_0 = arith.constant 0 : index
    %c0_1 = arith.constant 0 : index
    %0 = vector.load %arg1[%c0, %c0_0, %c0_1] : memref<1x8x256xf32, #tpu.memory_space<vmem>>, vector<1x8x256xf32>
    %1 = vector.shape_cast %0 : vector<1x8x256xf32> to vector<8x256xf32>
    %c0_2 = arith.constant 0 : index
    %c0_3 = arith.constant 0 : index
    %2 = vector.load %arg2[%c0_2, %c0_3] : memref<8x1xf32, #tpu.memory_space<vmem>>, vector<8x1xf32>
    %3 = vector.broadcast %2 : vector<8x1xf32> to vector<8x256xf32>
    %4 = arith.mulf %1, %3 : vector<8x256xf32>
    %c0_4 = arith.constant 0 : index
    %c0_5 = arith.constant 0 : index
    %5 = vector.load %arg3[%c0_4, %c0_5] : memref<8x1xf32, #tpu.memory_space<vmem>>, vector<8x1xf32>
    %6 = vector.broadcast %5 : vector<8x1xf32> to vector<8x256xf32>
    %7 = arith.addf %4, %6 : vector<8x256xf32>
    %cst = arith.constant 0.000000e+00 : f32
    %8 = vector.broadcast %cst : f32 to vector<8x256xf32>
    %9 = arith.maximumf %7, %8 : vector<8x256xf32>
    %10 = arith.truncf %9 : vector<8x256xf32> to vector<8x256xbf16>
    %c0_6 = arith.constant 0 : index
    %c0_7 = arith.constant 0 : index
    %11 = vector.load %arg4[%c0_6, %c0_7] : memref<8x8xbf16, #tpu.memory_space<vmem>>, vector<8x8xbf16>
    %cst_8 = arith.constant dense<0.000000e+00> : vector<8x256xf32>
    %12 = tpu.matmul %11, %10, %cst_8 {dimension_numbers = #tpu.dot_dimension_numbers<[1], [0], [0], [1], [0, 0, 1, 1], [], []>} : vector<8x8xbf16>, vector<8x256xbf16>, vector<8x256xf32> -> vector<8x256xf32>
    %cst_9 = arith.constant 0.000000e+00 : f32
    %13 = vector.broadcast %cst_9 : f32 to vector<8x256xf32>
    %14 = arith.maximumf %12, %13 : vector<8x256xf32>
    %c0_10 = arith.constant 0 : index
    %c0_11 = arith.constant 0 : index
    %15 = vector.load %arg5[%c0_10, %c0_11] : memref<8x1xf32, #tpu.memory_space<vmem>>, vector<8x1xf32>
    %16 = vector.broadcast %15 : vector<8x1xf32> to vector<8x256xf32>
    %17 = arith.mulf %14, %16 : vector<8x256xf32>
    %c0_12 = arith.constant 0 : index
    %c0_13 = arith.constant 0 : index
    %18 = vector.load %arg6[%c0_12, %c0_13] : memref<8x1xf32, #tpu.memory_space<vmem>>, vector<8x1xf32>
    %19 = vector.broadcast %18 : vector<8x1xf32> to vector<8x256xf32>
    %20 = arith.addf %17, %19 : vector<8x256xf32>
    %c0_14 = arith.constant 0 : index
    %c0_15 = arith.constant 0 : index
    %21 = vector.load %arg7[%c0_14, %c0_15] : memref<8x3xf32, #tpu.memory_space<vmem>>, vector<8x3xf32>
    %c0_16 = arith.constant 0 : index
    %c0_17 = arith.constant 0 : index
    %22 = vector.load %arg9[%c0_16, %c0_17] : memref<3x256xf32, #tpu.memory_space<vmem>>, vector<3x256xf32>
    %c16_i32 = arith.constant 16 : i32
    %23 = tpu.dynamic_rotate %20 by %c16_i32 dim 1 : vector<8x256xf32>, i32 -> vector<8x256xf32>
    %24 = vector.extract_strided_slice %22 {offsets = [0, 0], sizes = [1, 256], strides = [1, 1]} : vector<3x256xf32> to vector<1x256xf32>
    %25 = vector.broadcast %24 : vector<1x256xf32> to vector<8x256xf32>
    %26 = arith.mulf %25, %23 : vector<8x256xf32>
    %27 = vector.extract_strided_slice %21 {offsets = [0, 0], sizes = [8, 1], strides = [1, 1]} : vector<8x3xf32> to vector<8x1xf32>
    %28 = vector.broadcast %27 : vector<8x1xf32> to vector<8x256xf32>
    %29 = arith.mulf %28, %26 : vector<8x256xf32>
    %30 = vector.extract_strided_slice %21 {offsets = [0, 1], sizes = [8, 1], strides = [1, 1]} : vector<8x3xf32> to vector<8x1xf32>
    %31 = vector.broadcast %30 : vector<8x1xf32> to vector<8x256xf32>
    %32 = arith.mulf %31, %20 : vector<8x256xf32>
    %33 = arith.addf %29, %32 : vector<8x256xf32>
    %c240_i32 = arith.constant 240 : i32
    %34 = tpu.dynamic_rotate %20 by %c240_i32 dim 1 : vector<8x256xf32>, i32 -> vector<8x256xf32>
    %35 = vector.extract_strided_slice %22 {offsets = [2, 0], sizes = [1, 256], strides = [1, 1]} : vector<3x256xf32> to vector<1x256xf32>
    %36 = vector.broadcast %35 : vector<1x256xf32> to vector<8x256xf32>
    %37 = arith.mulf %36, %34 : vector<8x256xf32>
    %38 = vector.extract_strided_slice %21 {offsets = [0, 2], sizes = [8, 1], strides = [1, 1]} : vector<8x3xf32> to vector<8x1xf32>
    %39 = vector.broadcast %38 : vector<8x1xf32> to vector<8x256xf32>
    %40 = arith.mulf %39, %37 : vector<8x256xf32>
    %41 = arith.addf %33, %40 : vector<8x256xf32>
    %c0_18 = arith.constant 0 : index
    %c0_19 = arith.constant 0 : index
    %42 = vector.load %arg8[%c0_18, %c0_19] : memref<8x3xf32, #tpu.memory_space<vmem>>, vector<8x3xf32>
    %c0_20 = arith.constant 0 : index
    %c0_21 = arith.constant 0 : index
    %43 = vector.load %arg10[%c0_20, %c0_21] : memref<3x256xf32, #tpu.memory_space<vmem>>, vector<3x256xf32>
    %c1_i32 = arith.constant 1 : i32
    %44 = tpu.dynamic_rotate %41 by %c1_i32 dim 1 : vector<8x256xf32>, i32 -> vector<8x256xf32>
    %45 = vector.extract_strided_slice %43 {offsets = [0, 0], sizes = [1, 256], strides = [1, 1]} : vector<3x256xf32> to vector<1x256xf32>
    %46 = vector.broadcast %45 : vector<1x256xf32> to vector<8x256xf32>
    %47 = arith.mulf %46, %44 : vector<8x256xf32>
    %48 = vector.extract_strided_slice %42 {offsets = [0, 0], sizes = [8, 1], strides = [1, 1]} : vector<8x3xf32> to vector<8x1xf32>
    %49 = vector.broadcast %48 : vector<8x1xf32> to vector<8x256xf32>
    %50 = arith.mulf %49, %47 : vector<8x256xf32>
    %51 = vector.extract_strided_slice %42 {offsets = [0, 1], sizes = [8, 1], strides = [1, 1]} : vector<8x3xf32> to vector<8x1xf32>
    %52 = vector.broadcast %51 : vector<8x1xf32> to vector<8x256xf32>
    %53 = arith.mulf %52, %41 : vector<8x256xf32>
    %54 = arith.addf %50, %53 : vector<8x256xf32>
    %c255_i32 = arith.constant 255 : i32
    %55 = tpu.dynamic_rotate %41 by %c255_i32 dim 1 : vector<8x256xf32>, i32 -> vector<8x256xf32>
    %56 = vector.extract_strided_slice %43 {offsets = [2, 0], sizes = [1, 256], strides = [1, 1]} : vector<3x256xf32> to vector<1x256xf32>
    %57 = vector.broadcast %56 : vector<1x256xf32> to vector<8x256xf32>
    %58 = arith.mulf %57, %55 : vector<8x256xf32>
    %59 = vector.extract_strided_slice %42 {offsets = [0, 2], sizes = [8, 1], strides = [1, 1]} : vector<8x3xf32> to vector<8x1xf32>
    %60 = vector.broadcast %59 : vector<8x1xf32> to vector<8x256xf32>
    %61 = arith.mulf %60, %58 : vector<8x256xf32>
    %62 = arith.addf %54, %61 : vector<8x256xf32>
    %63 = arith.truncf %62 : vector<8x256xf32> to vector<8x256xbf16>
    %c0_22 = arith.constant 0 : index
    %c0_23 = arith.constant 0 : index
    %64 = vector.load %arg11[%c0_22, %c0_23] : memref<8x8xbf16, #tpu.memory_space<vmem>>, vector<8x8xbf16>
    %cst_24 = arith.constant dense<0.000000e+00> : vector<8x256xf32>
    %65 = tpu.matmul %64, %63, %cst_24 {dimension_numbers = #tpu.dot_dimension_numbers<[1], [0], [0], [1], [0, 0, 1, 1], [], []>} : vector<8x8xbf16>, vector<8x256xbf16>, vector<8x256xf32> -> vector<8x256xf32>
    %c0_25 = arith.constant 0 : index
    %c0_26 = arith.constant 0 : index
    %66 = vector.load %arg12[%c0_25, %c0_26] : memref<8x8xbf16, #tpu.memory_space<vmem>>, vector<8x8xbf16>
    %67 = arith.truncf %1 : vector<8x256xf32> to vector<8x256xbf16>
    %cst_27 = arith.constant dense<0.000000e+00> : vector<8x256xf32>
    %68 = tpu.matmul %66, %67, %cst_27 {dimension_numbers = #tpu.dot_dimension_numbers<[1], [0], [0], [1], [0, 0, 1, 1], [], []>} : vector<8x8xbf16>, vector<8x256xbf16>, vector<8x256xf32> -> vector<8x256xf32>
    %69 = arith.addf %65, %68 : vector<8x256xf32>
    %c0_28 = arith.constant 0 : index
    %c0_29 = arith.constant 0 : index
    %c0_30 = arith.constant 0 : index
    %70 = vector.load %arg13[%c0_28, %c0_29, %c0_30] : memref<1x8x256xf32, #tpu.memory_space<vmem>>, vector<1x8x256xf32>
    %71 = vector.shape_cast %70 : vector<1x8x256xf32> to vector<8x256xf32>
    %72 = vector.shape_cast %69 : vector<8x256xf32> to vector<1x8x256xf32>
    tpu.vector_store %arg13[%c0_28, %c0_29, %c0_30], %72 {strides = array<i32>} : memref<1x8x256xf32, #tpu.memory_space<vmem>>, vector<1x8x256xf32>,
    return
  }
  func.func @transform_0(%arg0: i32) -> (i32, i32, i32) {
    %c0_i32 = arith.constant 0 : i32
    %c0_i32_0 = arith.constant 0 : i32
    %c0_i32_1 = arith.constant 0 : i32
    return %arg0, %c0_i32, %c0_i32_0 : i32, i32, i32
  }
  func.func @transform_1(%arg0: i32) -> (i32, i32) {
    %c0_i32 = arith.constant 0 : i32
    %c0_i32_0 = arith.constant 0 : i32
    %c0_i32_1 = arith.constant 0 : i32
    return %c0_i32, %c0_i32_0 : i32, i32
  }
  func.func @transform_2(%arg0: i32) -> (i32, i32) {
    %c0_i32 = arith.constant 0 : i32
    %c0_i32_0 = arith.constant 0 : i32
    %c0_i32_1 = arith.constant 0 : i32
    return %c0_i32, %c0_i32_0 : i32, i32
  }
  func.func @transform_3(%arg0: i32) -> (i32, i32) {
    %c0_i32 = arith.constant 0 : i32
    %c0_i32_0 = arith.constant 0 : i32
    %c0_i32_1 = arith.constant 0 : i32
    return %c0_i32, %c0_i32_0 : i32, i32
  }
  func.func @transform_4(%arg0: i32) -> (i32, i32) {
    %c0_i32 = arith.constant 0 : i32
    %c0_i32_0 = arith.constant 0 : i32
    %c0_i32_1 = arith.constant 0 : i32
    return %c0_i32, %c0_i32_0 : i32, i32
  }
  func.func @transform_5(%arg0: i32) -> (i32, i32) {
    %c0_i32 = arith.constant 0 : i32
    %c0_i32_0 = arith.constant 0 : i32
    %c0_i32_1 = arith.constant 0 : i32
    return %c0_i32, %c0_i32_0 : i32, i32
  }
  func.func @transform_6(%arg0: i32) -> (i32, i32) {
    %c0_i32 = arith.constant 0 : i32
    %c0_i32_0 = arith.constant 0 : i32
    %c0_i32_1 = arith.constant 0 : i32
    return %c0_i32, %c0_i32_0 : i32, i32
  }
  func.func @transform_7(%arg0: i32) -> (i32, i32) {
    %c0_i32 = arith.constant 0 : i32
    %c0_i32_0 = arith.constant 0 : i32
    %c0_i32_1 = arith.constant 0 : i32
    return %c0_i32, %c0_i32_0 : i32, i32
  }
  func.func @transform_8(%arg0: i32) -> (i32, i32) {
    %c0_i32 = arith.constant 0 : i32
    %c0_i32_0 = arith.constant 0 : i32
    %c0_i32_1 = arith.constant 0 : i32
    return %c0_i32, %c0_i32_0 : i32, i32
  }
  func.func @transform_9(%arg0: i32) -> (i32, i32) {
    %c0_i32 = arith.constant 0 : i32
    %c0_i32_0 = arith.constant 0 : i32
    %c0_i32_1 = arith.constant 0 : i32
    return %c0_i32, %c0_i32_0 : i32, i32
  }
  func.func @transform_10(%arg0: i32) -> (i32, i32) {
    %c0_i32 = arith.constant 0 : i32
    %c0_i32_0 = arith.constant 0 : i32
    %c0_i32_1 = arith.constant 0 : i32
    return %c0_i32, %c0_i32_0 : i32, i32
  }
  func.func @transform_11(%arg0: i32) -> (i32, i32) {
    %c0_i32 = arith.constant 0 : i32
    %c0_i32_0 = arith.constant 0 : i32
    %c0_i32_1 = arith.constant 0 : i32
    return %c0_i32, %c0_i32_0 : i32, i32
  }
  func.func @transform_12(%arg0: i32) -> (i32, i32, i32) {
    %c0_i32 = arith.constant 0 : i32
    %c0_i32_0 = arith.constant 0 : i32
    %c0_i32_1 = arith.constant 0 : i32
    return %arg0, %c0_i32, %c0_i32_0 : i32, i32, i32
  }
}

module attributes {stable_mosaic.version = 11 : i64} {
  func.func @_basic_block_kernel(%arg0: i32, %arg1: memref<1x8x256xf32, #tpu.memory_space<vmem>>, %arg2: memref<8x1xf32, #tpu.memory_space<vmem>>, %arg3: memref<8x1xf32, #tpu.memory_space<vmem>>, %arg4: memref<8x8xbf16, #tpu.memory_space<vmem>>, %arg5: memref<8x1xf32, #tpu.memory_space<vmem>>, %arg6: memref<8x1xf32, #tpu.memory_space<vmem>>, %arg7: memref<8x3xf32, #tpu.memory_space<vmem>>, %arg8: memref<8x3xf32, #tpu.memory_space<vmem>>, %arg9: memref<3x256xf32, #tpu.memory_space<vmem>>, %arg10: memref<3x256xf32, #tpu.memory_space<vmem>>, %arg11: memref<8x8xbf16, #tpu.memory_space<vmem>>, %arg12: memref<8x8xbf16, #tpu.memory_space<vmem>>, %arg13: memref<1x8x256xf32, #tpu.memory_space<vmem>>) attributes {dimension_semantics = [#tpu.dimension_semantics<parallel>], iteration_bounds = array<i64: 2>, scalar_prefetch = 0 : i64, scratch_operands = 0 : i64, tpu.core_type = #tpu.core_type<tc>, window_params = [{transform_indices = @transform_0, window_bounds = array<i64: 1, 8, 256>}, {pipeline_mode = #tpu.pipeline_mode<synchronous>, transform_indices = @transform_1, window_bounds = array<i64: 8, 1>}, {pipeline_mode = #tpu.pipeline_mode<synchronous>, transform_indices = @transform_2, window_bounds = array<i64: 8, 1>}, {pipeline_mode = #tpu.pipeline_mode<synchronous>, transform_indices = @transform_3, window_bounds = array<i64: 8, 8>}, {pipeline_mode = #tpu.pipeline_mode<synchronous>, transform_indices = @transform_4, window_bounds = array<i64: 8, 1>}, {pipeline_mode = #tpu.pipeline_mode<synchronous>, transform_indices = @transform_5, window_bounds = array<i64: 8, 1>}, {pipeline_mode = #tpu.pipeline_mode<synchronous>, transform_indices = @transform_6, window_bounds = array<i64: 8, 3>}, {pipeline_mode = #tpu.pipeline_mode<synchronous>, transform_indices = @transform_7, window_bounds = array<i64: 8, 3>}, {pipeline_mode = #tpu.pipeline_mode<synchronous>, transform_indices = @transform_8, window_bounds = array<i64: 3, 256>}, {pipeline_mode = #tpu.pipeline_mode<synchronous>, transform_indices = @transform_9, window_bounds = array<i64: 3, 256>}, {pipeline_mode = #tpu.pipeline_mode<synchronous>, transform_indices = @transform_10, window_bounds = array<i64: 8, 8>}, {pipeline_mode = #tpu.pipeline_mode<synchronous>, transform_indices = @transform_11, window_bounds = array<i64: 8, 8>}, {transform_indices = @transform_12, window_bounds = array<i64: 1, 8, 256>}]} {
    %c0 = arith.constant 0 : index
    %c0_0 = arith.constant 0 : index
    %c0_1 = arith.constant 0 : index
    %0 = vector.load %arg1[%c0, %c0_0, %c0_1] : memref<1x8x256xf32, #tpu.memory_space<vmem>>, vector<1x8x256xf32>
    %1 = vector.shape_cast %0 : vector<1x8x256xf32> to vector<8x256xf32>
    %c0_2 = arith.constant 0 : index
    %c0_3 = arith.constant 0 : index
    %2 = vector.load %arg2[%c0_2, %c0_3] : memref<8x1xf32, #tpu.memory_space<vmem>>, vector<8x1xf32>
    %3 = vector.broadcast %2 : vector<8x1xf32> to vector<8x256xf32>
    %4 = arith.mulf %1, %3 : vector<8x256xf32>
    %c0_4 = arith.constant 0 : index
    %c0_5 = arith.constant 0 : index
    %5 = vector.load %arg3[%c0_4, %c0_5] : memref<8x1xf32, #tpu.memory_space<vmem>>, vector<8x1xf32>
    %6 = vector.broadcast %5 : vector<8x1xf32> to vector<8x256xf32>
    %7 = arith.addf %4, %6 : vector<8x256xf32>
    %cst = arith.constant 0.000000e+00 : f32
    %8 = vector.broadcast %cst : f32 to vector<8x256xf32>
    %9 = arith.maximumf %7, %8 : vector<8x256xf32>
    %10 = arith.truncf %9 : vector<8x256xf32> to vector<8x256xbf16>
    %c0_6 = arith.constant 0 : index
    %c0_7 = arith.constant 0 : index
    %11 = vector.load %arg4[%c0_6, %c0_7] : memref<8x8xbf16, #tpu.memory_space<vmem>>, vector<8x8xbf16>
    %cst_8 = arith.constant dense<0.000000e+00> : vector<8x256xf32>
    %12 = tpu.matmul %11, %10, %cst_8 {dimension_numbers = #tpu.dot_dimension_numbers<[1], [0], [0], [1], [0, 0, 1, 1], [], []>} : vector<8x8xbf16>, vector<8x256xbf16>, vector<8x256xf32> -> vector<8x256xf32>
    %cst_9 = arith.constant 0.000000e+00 : f32
    %13 = vector.broadcast %cst_9 : f32 to vector<8x256xf32>
    %14 = arith.maximumf %12, %13 : vector<8x256xf32>
    %c0_10 = arith.constant 0 : index
    %c0_11 = arith.constant 0 : index
    %15 = vector.load %arg5[%c0_10, %c0_11] : memref<8x1xf32, #tpu.memory_space<vmem>>, vector<8x1xf32>
    %16 = vector.broadcast %15 : vector<8x1xf32> to vector<8x256xf32>
    %17 = arith.mulf %14, %16 : vector<8x256xf32>
    %c0_12 = arith.constant 0 : index
    %c0_13 = arith.constant 0 : index
    %18 = vector.load %arg6[%c0_12, %c0_13] : memref<8x1xf32, #tpu.memory_space<vmem>>, vector<8x1xf32>
    %19 = vector.broadcast %18 : vector<8x1xf32> to vector<8x256xf32>
    %20 = arith.addf %17, %19 : vector<8x256xf32>
    %c0_14 = arith.constant 0 : index
    %c0_15 = arith.constant 0 : index
    %21 = vector.load %arg7[%c0_14, %c0_15] : memref<8x3xf32, #tpu.memory_space<vmem>>, vector<8x3xf32>
    %c0_16 = arith.constant 0 : index
    %c0_17 = arith.constant 0 : index
    %22 = vector.load %arg9[%c0_16, %c0_17] : memref<3x256xf32, #tpu.memory_space<vmem>>, vector<3x256xf32>
    %c16_i32 = arith.constant 16 : i32
    %23 = tpu.dynamic_rotate %20 by %c16_i32 dim 1 : vector<8x256xf32>, i32 -> vector<8x256xf32>
    %24 = vector.extract_strided_slice %22 {offsets = [0, 0], sizes = [1, 256], strides = [1, 1]} : vector<3x256xf32> to vector<1x256xf32>
    %25 = vector.broadcast %24 : vector<1x256xf32> to vector<8x256xf32>
    %26 = arith.mulf %25, %23 : vector<8x256xf32>
    %27 = vector.extract_strided_slice %21 {offsets = [0, 0], sizes = [8, 1], strides = [1, 1]} : vector<8x3xf32> to vector<8x1xf32>
    %28 = vector.broadcast %27 : vector<8x1xf32> to vector<8x256xf32>
    %29 = arith.mulf %28, %26 : vector<8x256xf32>
    %30 = vector.extract_strided_slice %21 {offsets = [0, 1], sizes = [8, 1], strides = [1, 1]} : vector<8x3xf32> to vector<8x1xf32>
    %31 = vector.broadcast %30 : vector<8x1xf32> to vector<8x256xf32>
    %32 = arith.mulf %31, %20 : vector<8x256xf32>
    %33 = arith.addf %29, %32 : vector<8x256xf32>
    %c240_i32 = arith.constant 240 : i32
    %34 = tpu.dynamic_rotate %20 by %c240_i32 dim 1 : vector<8x256xf32>, i32 -> vector<8x256xf32>
    %35 = vector.extract_strided_slice %22 {offsets = [2, 0], sizes = [1, 256], strides = [1, 1]} : vector<3x256xf32> to vector<1x256xf32>
    %36 = vector.broadcast %35 : vector<1x256xf32> to vector<8x256xf32>
    %37 = arith.mulf %36, %34 : vector<8x256xf32>
    %38 = vector.extract_strided_slice %21 {offsets = [0, 2], sizes = [8, 1], strides = [1, 1]} : vector<8x3xf32> to vector<8x1xf32>
    %39 = vector.broadcast %38 : vector<8x1xf32> to vector<8x256xf32>
    %40 = arith.mulf %39, %37 : vector<8x256xf32>
    %41 = arith.addf %33, %40 : vector<8x256xf32>
    %c0_18 = arith.constant 0 : index
    %c0_19 = arith.constant 0 : index
    %42 = vector.load %arg8[%c0_18, %c0_19] : memref<8x3xf32, #tpu.memory_space<vmem>>, vector<8x3xf32>
    %c0_20 = arith.constant 0 : index
    %c0_21 = arith.constant 0 : index
    %43 = vector.load %arg10[%c0_20, %c0_21] : memref<3x256xf32, #tpu.memory_space<vmem>>, vector<3x256xf32>
    %c1_i32 = arith.constant 1 : i32
    %44 = tpu.dynamic_rotate %41 by %c1_i32 dim 1 : vector<8x256xf32>, i32 -> vector<8x256xf32>
    %45 = vector.extract_strided_slice %43 {offsets = [0, 0], sizes = [1, 256], strides = [1, 1]} : vector<3x256xf32> to vector<1x256xf32>
    %46 = vector.broadcast %45 : vector<1x256xf32> to vector<8x256xf32>
    %47 = arith.mulf %46, %44 : vector<8x256xf32>
    %48 = vector.extract_strided_slice %42 {offsets = [0, 0], sizes = [8, 1], strides = [1, 1]} : vector<8x3xf32> to vector<8x1xf32>
    %49 = vector.broadcast %48 : vector<8x1xf32> to vector<8x256xf32>
    %50 = arith.mulf %49, %47 : vector<8x256xf32>
    %51 = vector.extract_strided_slice %42 {offsets = [0, 1], sizes = [8, 1], strides = [1, 1]} : vector<8x3xf32> to vector<8x1xf32>
    %52 = vector.broadcast %51 : vector<8x1xf32> to vector<8x256xf32>
    %53 = arith.mulf %52, %41 : vector<8x256xf32>
    %54 = arith.addf %50, %53 : vector<8x256xf32>
    %c255_i32 = arith.constant 255 : i32
    %55 = tpu.dynamic_rotate %41 by %c255_i32 dim 1 : vector<8x256xf32>, i32 -> vector<8x256xf32>
    %56 = vector.extract_strided_slice %43 {offsets = [2, 0], sizes = [1, 256], strides = [1, 1]} : vector<3x256xf32> to vector<1x256xf32>
    %57 = vector.broadcast %56 : vector<1x256xf32> to vector<8x256xf32>
    %58 = arith.mulf %57, %55 : vector<8x256xf32>
    %59 = vector.extract_strided_slice %42 {offsets = [0, 2], sizes = [8, 1], strides = [1, 1]} : vector<8x3xf32> to vector<8x1xf32>
    %60 = vector.broadcast %59 : vector<8x1xf32> to vector<8x256xf32>
    %61 = arith.mulf %60, %58 : vector<8x256xf32>
    %62 = arith.addf %54, %61 : vector<8x256xf32>
    %63 = arith.truncf %62 : vector<8x256xf32> to vector<8x256xbf16>
    %c0_22 = arith.constant 0 : index
    %c0_23 = arith.constant 0 : index
    %64 = vector.load %arg11[%c0_22, %c0_23] : memref<8x8xbf16, #tpu.memory_space<vmem>>, vector<8x8xbf16>
    %cst_24 = arith.constant dense<0.000000e+00> : vector<8x256xf32>
    %65 = tpu.matmul %64, %63, %cst_24 {dimension_numbers = #tpu.dot_dimension_numbers<[1], [0], [0], [1], [0, 0, 1, 1], [], []>} : vector<8x8xbf16>, vector<8x256xbf16>, vector<8x256xf32> -> vector<8x256xf32>
    %c0_25 = arith.constant 0 : index
    %c0_26 = arith.constant 0 : index
    %66 = vector.load %arg12[%c0_25, %c0_26] : memref<8x8xbf16, #tpu.memory_space<vmem>>, vector<8x8xbf16>
    %67 = arith.truncf %1 : vector<8x256xf32> to vector<8x256xbf16>
    %cst_27 = arith.constant dense<0.000000e+00> : vector<8x256xf32>
    %68 = tpu.matmul %66, %67, %cst_27 {dimension_numbers = #tpu.dot_dimension_numbers<[1], [0], [0], [1], [0, 0, 1, 1], [], []>} : vector<8x8xbf16>, vector<8x256xbf16>, vector<8x256xf32> -> vector<8x256xf32>
    %69 = arith.addf %65, %68 : vector<8x256xf32>
    %c0_28 = arith.constant 0 : index
    %c0_29 = arith.constant 0 : index
    %c0_30 = arith.constant 0 : index
    %70 = vector.load %arg13[%c0_28, %c0_29, %c0_30] : memref<1x8x256xf32, #tpu.memory_space<vmem>>, vector<1x8x256xf32>
    %71 = vector.shape_cast %70 : vector<1x8x256xf32> to vector<8x256xf32>
    %72 = vector.shape_cast %69 : vector<8x256xf32> to vector<1x8x256xf32>
    tpu.vector_store %arg13[%c0_28, %c0_29, %c0_30], %72 {strides = array<i32>} : memref<1x8x256xf32, #tpu.memory_space<vmem>>, vector<1x8x256xf32>,
    return
  }
  func.func @transform_0(%arg0: i32) -> (i32, i32, i32) {
    %c0_i32 = arith.constant 0 : i32
    %c0_i32_0 = arith.constant 0 : i32
    %c0_i32_1 = arith.constant 0 : i32
    return %arg0, %c0_i32, %c0_i32_0 : i32, i32, i32
  }
  func.func @transform_1(%arg0: i32) -> (i32, i32) {
    %c0_i32 = arith.constant 0 : i32
    %c0_i32_0 = arith.constant 0 : i32
    %c0_i32_1 = arith.constant 0 : i32
    return %c0_i32, %c0_i32_0 : i32, i32
  }
  func.func @transform_2(%arg0: i32) -> (i32, i32) {
    %c0_i32 = arith.constant 0 : i32
    %c0_i32_0 = arith.constant 0 : i32
    %c0_i32_1 = arith.constant 0 : i32
    return %c0_i32, %c0_i32_0 : i32, i32
  }
  func.func @transform_3(%arg0: i32) -> (i32, i32) {
    %c0_i32 = arith.constant 0 : i32
    %c0_i32_0 = arith.constant 0 : i32
    %c0_i32_1 = arith.constant 0 : i32
    return %c0_i32, %c0_i32_0 : i32, i32
  }
  func.func @transform_4(%arg0: i32) -> (i32, i32) {
    %c0_i32 = arith.constant 0 : i32
    %c0_i32_0 = arith.constant 0 : i32
    %c0_i32_1 = arith.constant 0 : i32
    return %c0_i32, %c0_i32_0 : i32, i32
  }
  func.func @transform_5(%arg0: i32) -> (i32, i32) {
    %c0_i32 = arith.constant 0 : i32
    %c0_i32_0 = arith.constant 0 : i32
    %c0_i32_1 = arith.constant 0 : i32
    return %c0_i32, %c0_i32_0 : i32, i32
  }
  func.func @transform_6(%arg0: i32) -> (i32, i32) {
    %c0_i32 = arith.constant 0 : i32
    %c0_i32_0 = arith.constant 0 : i32
    %c0_i32_1 = arith.constant 0 : i32
    return %c0_i32, %c0_i32_0 : i32, i32
  }
  func.func @transform_7(%arg0: i32) -> (i32, i32) {
    %c0_i32 = arith.constant 0 : i32
    %c0_i32_0 = arith.constant 0 : i32
    %c0_i32_1 = arith.constant 0 : i32
    return %c0_i32, %c0_i32_0 : i32, i32
  }
  func.func @transform_8(%arg0: i32) -> (i32, i32) {
    %c0_i32 = arith.constant 0 : i32
    %c0_i32_0 = arith.constant 0 : i32
    %c0_i32_1 = arith.constant 0 : i32
    return %c0_i32, %c0_i32_0 : i32, i32
  }
  func.func @transform_9(%arg0: i32) -> (i32, i32) {
    %c0_i32 = arith.constant 0 : i32
    %c0_i32_0 = arith.constant 0 : i32
    %c0_i32_1 = arith.constant 0 : i32
    return %c0_i32, %c0_i32_0 : i32, i32
  }
  func.func @transform_10(%arg0: i32) -> (i32, i32) {
    %c0_i32 = arith.constant 0 : i32
    %c0_i32_0 = arith.constant 0 : i32
    %c0_i32_1 = arith.constant 0 : i32
    return %c0_i32, %c0_i32_0 : i32, i32
  }
  func.func @transform_11(%arg0: i32) -> (i32, i32) {
    %c0_i32 = arith.constant 0 : i32
    %c0_i32_0 = arith.constant 0 : i32
    %c0_i32_1 = arith.constant 0 : i32
    return %c0_i32, %c0_i32_0 : i32, i32
  }
  func.func @transform_12(%arg0: i32) -> (i32, i32, i32) {
    %c0_i32 = arith.constant 0 : i32
    %c0_i32_0 = arith.constant 0 : i32
    %c0_i32_1 = arith.constant 0 : i32
    return %arg0, %c0_i32, %c0_i32_0 : i32, i32, i32
  }
}

</mosaic_0001>

<llo_original>
// kernel: tpu_custom_call.1
$region0: #{tpu_custom_call.1}
  #allocation0 [shape = 'u32[]', space=smem, size = 0x4, offset = 0x4, fixed_abs, tag = 'smem constant byte address 0x4 - core index']
  #allocation1 [shape = 'u32[144,128]{1,0:T(1,128)}', space=vmem, size = 0x12000, scoped, tag = 'internal scratch']
  %s0 = inlined_call_operand.hbm [shape: f32[2,8,256], index: 0, kind: input, shape index: {}]
  %s1 = inlined_call_operand.hbm [shape: f32[8,1], index: 1, kind: input, shape index: {}]
  %s2 = inlined_call_operand.hbm [shape: f32[8,1], index: 2, kind: input, shape index: {}]
  %s3 = inlined_call_operand.hbm [shape: bf16[8,8], index: 3, kind: input, shape index: {}]
  %s4 = inlined_call_operand.hbm [shape: f32[8,1], index: 4, kind: input, shape index: {}]
  %s5 = inlined_call_operand.hbm [shape: f32[8,1], index: 5, kind: input, shape index: {}]
  %s6 = inlined_call_operand.hbm [shape: f32[8,3], index: 6, kind: input, shape index: {}]
  %s7 = inlined_call_operand.hbm [shape: f32[8,3], index: 7, kind: input, shape index: {}]
  %s8 = inlined_call_operand.hbm [shape: f32[3,256], index: 8, kind: input, shape index: {}]
  %s9 = inlined_call_operand.hbm [shape: f32[3,256], index: 9, kind: input, shape index: {}]
  %s10 = inlined_call_operand.hbm [shape: bf16[8,8], index: 10, kind: input, shape index: {}]
  %s11 = inlined_call_operand.hbm [shape: bf16[8,8], index: 11, kind: input, shape index: {}]
  %s12 = inlined_call_operand.hbm [shape: f32[2,8,256], index: 12, kind: output, shape index: {}]
  %s13 = sld [smem:[#allocation0]]
  $region129: #{tpu_custom_call.1} parent=0
    _
  %s15 = ssub.s32 1, %s13
  %s16 = scalar_select 0, %s15, %s13
  $region1: #{tpu_custom_call.1} parent=0
    #allocation2 [shape = 'u8[16384]{0}', space=vmem, size = 0x4000, scoped, tag = 'input window, operand 0']
    #allocation3 [shape = 's32[2]{0}', space=sflag, size = 0x8, scoped, tag = 'scoped memory for tpu_custom_call.1']
    #allocation4 [shape = 's32[2]{0}', space=sflag, size = 0x8, scoped, tag = 'scoped memory for tpu_custom_call.1']
    #allocation5 [shape = 'u8[4096]{0}', space=vmem, size = 0x1000, scoped, tag = 'input window, operand 1, single buffered']
    #allocation6 [shape = 's32[1]{0}', space=sflag, size = 0x4, scoped, tag = 'scoped memory for tpu_custom_call.1']
    #allocation7 [shape = 'u8[4096]{0}', space=vmem, size = 0x1000, scoped, tag = 'input window, operand 2, single buffered']
    #allocation8 [shape = 'u8[2048]{0}', space=vmem, size = 0x800, scoped, tag = 'input window, operand 3, single buffered']
    #allocation9 [shape = 's32[1]{0}', space=sflag, size = 0x4, scoped, tag = 'scoped memory for tpu_custom_call.1']
    #allocation10 [shape = 'u8[4096]{0}', space=vmem, size = 0x1000, scoped, tag = 'input window, operand 4, single buffered']
    #allocation11 [shape = 'u8[4096]{0}', space=vmem, size = 0x1000, scoped, tag = 'input window, operand 5, single buffered']
    #allocation12 [shape = 's32[1]{0}', space=sflag, size = 0x4, scoped, tag = 'scoped memory for tpu_custom_call.1']
    #allocation13 [shape = 'u8[4096]{0}', space=vmem, size = 0x1000, scoped, tag = 'input window, operand 6, single buffered']
    #allocation14 [shape = 'u8[4096]{0}', space=vmem, size = 0x1000, scoped, tag = 'input window, operand 7, single buffered']
    #allocation15 [shape = 's32[1]{0}', space=sflag, size = 0x4, scoped, tag = 'scoped memory for tpu_custom_call.1']
    #allocation16 [shape = 'u8[4096]{0}', space=vmem, size = 0x1000, scoped, tag = 'input window, operand 8, single buffered']
    #allocation17 [shape = 'u8[4096]{0}', space=vmem, size = 0x1000, scoped, tag = 'input window, operand 9, single buffered']
    #allocation18 [shape = 's32[1]{0}', space=sflag, size = 0x4, scoped, tag = 'scoped memory for tpu_custom_call.1']
    #allocation19 [shape = 'u8[2048]{0}', space=vmem, size = 0x800, scoped, tag = 'input window, operand 10, single buffered']
    #allocation20 [shape = 'u8[2048]{0}', space=vmem, size = 0x800, scoped, tag = 'input window, operand 11, single buffered']
    #allocation21 [shape = 's32[1]{0}', space=sflag, size = 0x4, scoped, tag = 'scoped memory for tpu_custom_call.1']
    #allocation22 [shape = 'u8[16384]{0}', space=vmem, size = 0x4000, scoped, tag = 'output window, operand 0']
    %17 = vsyncpa [#allocation3], 0
    %s18 = scalar_lea.sflag [#allocation3], 1
    %19 = vsyncpa %s18, 0
    %20 = vsyncpa [#allocation6], 0
    %21 = vsyncpa [#allocation9], 0
    %22 = vsyncpa [#allocation12], 0
    %23 = vsyncpa [#allocation15], 0
    %24 = vsyncpa [#allocation18], 0
    %25 = vsyncpa [#allocation21], 0
    %26 = vsyncpa [#allocation4], 0
    %s27 = scalar_lea.sflag [#allocation4], 1
    %28 = vsyncpa %s27, 0
    loop: start=0, step=1, limit=4
    $region2: #{tpu_custom_call.1} parent=1 // loop_pre_header
      _
    $region3: #{tpu_custom_call.1} parent=1 // loop_header
      %s30 = sphi 0, %s34
      %p31 = scmp.ge.s32.totalorder %s30, 4
      %s40 = sphi 0, %s42
      %s43 = sphi 0, %s40
      %s44 = sphi 0, %s43
      %s60 = sphi 0, %s44
      %s64 = sphi 0, %s64
      %s66 = sphi 0, %s64
      %s67 = sphi 0, %s66
      %s81 = sphi 0, %s67
      %s85 = sphi 0, %s85
      %s87 = sphi 0, %s85
      %s88 = sphi 0, %s87
      %s102 = sphi 0, %s88
      %s106 = sphi 0, %s106
      %s108 = sphi 0, %s106
      %s109 = sphi 0, %s108
      %s123 = sphi 0, %s109
      %s127 = sphi 0, %s127
      %s129 = sphi 0, %s127
      %s130 = sphi 0, %s129
      %s144 = sphi 0, %s130
      %s148 = sphi 0, %s148
      %s150 = sphi 0, %s148
      %s151 = sphi 0, %s150
      %s165 = sphi 0, %s151
      %s169 = sphi 0, %s169
      %s171 = sphi 0, %s169
      %s172 = sphi 0, %s171
      %s186 = sphi 0, %s172
      %s190 = sphi 0, %s190
      %s192 = sphi 0, %s190
      %s193 = sphi 0, %s192
      %s207 = sphi 0, %s193
      %s211 = sphi 0, %s211
      %s213 = sphi 0, %s211
      %s214 = sphi 0, %s213
      %s228 = sphi 0, %s214
      %s232 = sphi 0, %s232
      %s234 = sphi 0, %s232
      %s235 = sphi 0, %s234
      %s249 = sphi 0, %s235
      %s253 = sphi 0, %s253
      %s255 = sphi 0, %s253
      %s256 = sphi 0, %s255
      %s270 = sphi 0, %s256
      %s274 = sphi 0, %s274
      %s276 = sphi 0, %s274
      %s277 = sphi 0, %s276
      %s291 = sphi 0, %s277
      %s297 = sphi 0, %s299
      %s300 = sphi 0, %s297
      %s301 = sphi 0, %s300
      %s317 = sphi 0, %s301
    $region4: #{tpu_custom_call.1} parent=1 // loop_header_branch
      %33 = sbr.rel (%p31) target = $region8
    $region5: #{tpu_custom_call.1} parent=1 // loop_body
      %s35 = ssub.s32 %s30, 1
      %s36 = ssub.s32 %s30, 2
      %s37 = sadd.s32 %s30, 1
      %s38 = ssub.s32 %s30, %s37
      %p39 = scmp.eq.s32.totalorder %s38, 0
      %s41 = sadd.s32 %s40, 1
      %s42 = scalar_select %p39, %s40, %s41
      %p45 = pneg %p39
      %p46 = scmp.eq.s32.totalorder %s30, 1
      %p47 = por %p45, %p46
      %p48 = scmp.ne.s32.totalorder %s40, %s43
      %p49 = scmp.eq.s32.totalorder %s30, 0
      %p50 = por %p48, %p49
      %p51 = scmp.ne.s32.totalorder %s40, %s43
      %p52 = scmp.eq.s32.totalorder %s35, 1
      %p53 = por %p51, %p52
      %p54 = scmp.ne.s32.totalorder %s43, %s44
      %p55 = scmp.eq.s32.totalorder %s35, 0
      %p56 = por %p54, %p55
      %p57 = scmp.ne.s32.totalorder %s43, %s44
      %p58 = scmp.eq.s32.totalorder %s36, 1
      %p59 = por %p57, %p58
      %p61 = scmp.ne.s32.totalorder %s44, %s60
      %p62 = scmp.eq.s32.totalorder %s36, 0
      %p63 = por %p61, %p62
      %s65 = sadd.s32 %s64, 1
      %p68 = scmp.eq.s32.totalorder %s30, 1
      %p69 = scmp.ne.s32.totalorder %s64, %s66
      %p70 = scmp.eq.s32.totalorder %s30, 0
      %p71 = por %p69, %p70
      %p72 = scmp.ne.s32.totalorder %s64, %s66
      %p73 = scmp.eq.s32.totalorder %s35, 1
      %p74 = por %p72, %p73
      %p75 = scmp.ne.s32.totalorder %s66, %s67
      %p76 = scmp.eq.s32.totalorder %s35, 0
      %p77 = por %p75, %p76
      %p78 = scmp.ne.s32.totalorder %s66, %s67
      %p79 = scmp.eq.s32.totalorder %s36, 1
      %p80 = por %p78, %p79
      %p82 = scmp.ne.s32.totalorder %s67, %s81
      %p83 = scmp.eq.s32.totalorder %s36, 0
      %p84 = por %p82, %p83
      %s86 = sadd.s32 %s85, 1
      %p89 = scmp.eq.s32.totalorder %s30, 1
      %p90 = scmp.ne.s32.totalorder %s85, %s87
      %p91 = scmp.eq.s32.totalorder %s30, 0
      %p92 = por %p90, %p91
      %p93 = scmp.ne.s32.totalorder %s85, %s87
      %p94 = scmp.eq.s32.totalorder %s35, 1
      %p95 = por %p93, %p94
      %p96 = scmp.ne.s32.totalorder %s87, %s88
      %p97 = scmp.eq.s32.totalorder %s35, 0
      %p98 = por %p96, %p97
      %p99 = scmp.ne.s32.totalorder %s87, %s88
      %p100 = scmp.eq.s32.totalorder %s36, 1
      %p101 = por %p99, %p100
      %p103 = scmp.ne.s32.totalorder %s88, %s102
      %p104 = scmp.eq.s32.totalorder %s36, 0
      %p105 = por %p103, %p104
      %s107 = sadd.s32 %s106, 1
      %p110 = scmp.eq.s32.totalorder %s30, 1
      %p111 = scmp.ne.s32.totalorder %s106, %s108
      %p112 = scmp.eq.s32.totalorder %s30, 0
      %p113 = por %p111, %p112
      %p114 = scmp.ne.s32.totalorder %s106, %s108
      %p115 = scmp.eq.s32.totalorder %s35, 1
      %p116 = por %p114, %p115
      %p117 = scmp.ne.s32.totalorder %s108, %s109
      %p118 = scmp.eq.s32.totalorder %s35, 0
      %p119 = por %p117, %p118
      %p120 = scmp.ne.s32.totalorder %s108, %s109
      %p121 = scmp.eq.s32.totalorder %s36, 1
      %p122 = por %p120, %p121
      %p124 = scmp.ne.s32.totalorder %s109, %s123
      %p125 = scmp.eq.s32.totalorder %s36, 0
      %p126 = por %p124, %p125
      %s128 = sadd.s32 %s127, 1
      %p131 = scmp.eq.s32.totalorder %s30, 1
      %p132 = scmp.ne.s32.totalorder %s127, %s129
      %p133 = scmp.eq.s32.totalorder %s30, 0
      %p134 = por %p132, %p133
      %p135 = scmp.ne.s32.totalorder %s127, %s129
      %p136 = scmp.eq.s32.totalorder %s35, 1
      %p137 = por %p135, %p136
      %p138 = scmp.ne.s32.totalorder %s129, %s130
      %p139 = scmp.eq.s32.totalorder %s35, 0
      %p140 = por %p138, %p139
      %p141 = scmp.ne.s32.totalorder %s129, %s130
      %p142 = scmp.eq.s32.totalorder %s36, 1
      %p143 = por %p141, %p142
      %p145 = scmp.ne.s32.totalorder %s130, %s144
      %p146 = scmp.eq.s32.totalorder %s36, 0
      %p147 = por %p145, %p146
      %s149 = sadd.s32 %s148, 1
      %p152 = scmp.eq.s32.totalorder %s30, 1
      %p153 = scmp.ne.s32.totalorder %s148, %s150
      %p154 = scmp.eq.s32.totalorder %s30, 0
      %p155 = por %p153, %p154
      %p156 = scmp.ne.s32.totalorder %s148, %s150
      %p157 = scmp.eq.s32.totalorder %s35, 1
      %p158 = por %p156, %p157
      %p159 = scmp.ne.s32.totalorder %s150, %s151
      %p160 = scmp.eq.s32.totalorder %s35, 0
      %p161 = por %p159, %p160
      %p162 = scmp.ne.s32.totalorder %s150, %s151
      %p163 = scmp.eq.s32.totalorder %s36, 1
      %p164 = por %p162, %p163
      %p166 = scmp.ne.s32.totalorder %s151, %s165
      %p167 = scmp.eq.s32.totalorder %s36, 0
      %p168 = por %p166, %p167
      %s170 = sadd.s32 %s169, 1
      %p173 = scmp.eq.s32.totalorder %s30, 1
      %p174 = scmp.ne.s32.totalorder %s169, %s171
      %p175 = scmp.eq.s32.totalorder %s30, 0
      %p176 = por %p174, %p175
      %p177 = scmp.ne.s32.totalorder %s169, %s171
      %p178 = scmp.eq.s32.totalorder %s35, 1
      %p179 = por %p177, %p178
      %p180 = scmp.ne.s32.totalorder %s171, %s172
      %p181 = scmp.eq.s32.totalorder %s35, 0
      %p182 = por %p180, %p181
      %p183 = scmp.ne.s32.totalorder %s171, %s172
      %p184 = scmp.eq.s32.totalorder %s36, 1
      %p185 = por %p183, %p184
      %p187 = scmp.ne.s32.totalorder %s172, %s186
      %p188 = scmp.eq.s32.totalorder %s36, 0
      %p189 = por %p187, %p188
      %s191 = sadd.s32 %s190, 1
      %p194 = scmp.eq.s32.totalorder %s30, 1
      %p195 = scmp.ne.s32.totalorder %s190, %s192
      %p196 = scmp.eq.s32.totalorder %s30, 0
      %p197 = por %p195, %p196
      %p198 = scmp.ne.s32.totalorder %s190, %s192
      %p199 = scmp.eq.s32.totalorder %s35, 1
      %p200 = por %p198, %p199
      %p201 = scmp.ne.s32.totalorder %s192, %s193
      %p202 = scmp.eq.s32.totalorder %s35, 0
      %p203 = por %p201, %p202
      %p204 = scmp.ne.s32.totalorder %s192, %s193
      %p205 = scmp.eq.s32.totalorder %s36, 1
      %p206 = por %p204, %p205
      %p208 = scmp.ne.s32.totalorder %s193, %s207
      %p209 = scmp.eq.s32.totalorder %s36, 0
      %p210 = por %p208, %p209
      %s212 = sadd.s32 %s211, 1
      %p215 = scmp.eq.s32.totalorder %s30, 1
      %p216 = scmp.ne.s32.totalorder %s211, %s213
      %p217 = scmp.eq.s32.totalorder %s30, 0
      %p218 = por %p216, %p217
      %p219 = scmp.ne.s32.totalorder %s211, %s213
      %p220 = scmp.eq.s32.totalorder %s35, 1
      %p221 = por %p219, %p220
      %p222 = scmp.ne.s32.totalorder %s213, %s214
      %p223 = scmp.eq.s32.totalorder %s35, 0
      %p224 = por %p222, %p223
      %p225 = scmp.ne.s32.totalorder %s213, %s214
      %p226 = scmp.eq.s32.totalorder %s36, 1
      %p227 = por %p225, %p226
      %p229 = scmp.ne.s32.totalorder %s214, %s228
      %p230 = scmp.eq.s32.totalorder %s36, 0
      %p231 = por %p229, %p230
      %s233 = sadd.s32 %s232, 1
      %p236 = scmp.eq.s32.totalorder %s30, 1
      %p237 = scmp.ne.s32.totalorder %s232, %s234
      %p238 = scmp.eq.s32.totalorder %s30, 0
      %p239 = por %p237, %p238
      %p240 = scmp.ne.s32.totalorder %s232, %s234
      %p241 = scmp.eq.s32.totalorder %s35, 1
      %p242 = por %p240, %p241
      %p243 = scmp.ne.s32.totalorder %s234, %s235
      %p244 = scmp.eq.s32.totalorder %s35, 0
      %p245 = por %p243, %p244
      %p246 = scmp.ne.s32.totalorder %s234, %s235
      %p247 = scmp.eq.s32.totalorder %s36, 1
      %p248 = por %p246, %p247
      %p250 = scmp.ne.s32.totalorder %s235, %s249
      %p251 = scmp.eq.s32.totalorder %s36, 0
      %p252 = por %p250, %p251
      %s254 = sadd.s32 %s253, 1
      %p257 = scmp.eq.s32.totalorder %s30, 1
      %p258 = scmp.ne.s32.totalorder %s253, %s255
      %p259 = scmp.eq.s32.totalorder %s30, 0
      %p260 = por %p258, %p259
      %p261 = scmp.ne.s32.totalorder %s253, %s255
      %p262 = scmp.eq.s32.totalorder %s35, 1
      %p263 = por %p261, %p262
      %p264 = scmp.ne.s32.totalorder %s255, %s256
      %p265 = scmp.eq.s32.totalorder %s35, 0
      %p266 = por %p264, %p265
      %p267 = scmp.ne.s32.totalorder %s255, %s256
      %p268 = scmp.eq.s32.totalorder %s36, 1
      %p269 = por %p267, %p268
      %p271 = scmp.ne.s32.totalorder %s256, %s270
      %p272 = scmp.eq.s32.totalorder %s36, 0
      %p273 = por %p271, %p272
      %s275 = sadd.s32 %s274, 1
      %p278 = scmp.eq.s32.totalorder %s30, 1
      %p279 = scmp.ne.s32.totalorder %s274, %s276
      %p280 = scmp.eq.s32.totalorder %s30, 0
      %p281 = por %p279, %p280
      %p282 = scmp.ne.s32.totalorder %s274, %s276
      %p283 = scmp.eq.s32.totalorder %s35, 1
      %p284 = por %p282, %p283
      %p285 = scmp.ne.s32.totalorder %s276, %s277
      %p286 = scmp.eq.s32.totalorder %s35, 0
      %p287 = por %p285, %p286
      %p288 = scmp.ne.s32.totalorder %s276, %s277
      %p289 = scmp.eq.s32.totalorder %s36, 1
      %p290 = por %p288, %p289
      %p292 = scmp.ne.s32.totalorder %s277, %s291
      %p293 = scmp.eq.s32.totalorder %s36, 0
      %p294 = por %p292, %p293
      %s295 = ssub.s32 %s30, %s37
      %p296 = scmp.eq.s32.totalorder %s295, 0
      %s298 = sadd.s32 %s297, 1
      %s299 = scalar_select %p296, %s297, %s298
      %p302 = pneg %p296
      %p303 = scmp.eq.s32.totalorder %s30, 1
      %p304 = por %p302, %p303
      %p305 = scmp.ne.s32.totalorder %s297, %s300
      %p306 = scmp.eq.s32.totalorder %s30, 0
      %p307 = por %p305, %p306
      %p308 = scmp.ne.s32.totalorder %s297, %s300
      %p309 = scmp.eq.s32.totalorder %s35, 1
      %p310 = por %p308, %p309
      %p311 = scmp.ne.s32.totalorder %s300, %s301
      %p312 = scmp.eq.s32.totalorder %s35, 0
      %p313 = por %p311, %p312
      %p314 = scmp.ne.s32.totalorder %s300, %s301
      %p315 = scmp.eq.s32.totalorder %s36, 1
      %p316 = por %p314, %p315
      %p318 = scmp.ne.s32.totalorder %s301, %s317
      %p319 = scmp.eq.s32.totalorder %s36, 0
      %p320 = por %p318, %p319
      %p321 = scmp.le.s32.totalorder 1, %s30
      %p322 = scmp.lt.s32.totalorder %s30, 3
      %p323 = pnand %p321, %p322
      %p324 = pneg %p323
      // Predicated region
      $region9: #{tpu_custom_call.1} parent=5 // pred_check
        _
      $region10: #{tpu_custom_call.1} parent=5 // pred_check_branch
        %326 = sbr.rel (%p323) target = $region12
      $region11: #{tpu_custom_call.1} parent=5 // pred_region
        %s327 = ssub.s32 %s30, 1
        // Predicated region
        $region13: #{tpu_custom_call.1} parent=11 // pred_check
          %p328 = pneg %p77
        $region14: #{tpu_custom_call.1} parent=11 // pred_check_branch
          %330 = sbr.rel (%p328) target = $region16
        $region15: #{tpu_custom_call.1} parent=11 // pred_region
          %s332 = ssub.s32 128, 128
          %333 = vsyncadd [#allocation6], %s332
          %s335 = sshll.u32 [#allocation5], 4
          %s336 = int_to_ptr.vmem [resolvable:$true] %s335
          %338 = dma.hbm_to_vmem [thread:$0]  %s1, 128, %s336, [#allocation6]
        $region16: #{tpu_custom_call.1} parent=11 // pred_fallthru
          _
        // Predicated region
        $region17: #{tpu_custom_call.1} parent=11 // pred_check
          %p339 = pneg %p98
        $region18: #{tpu_custom_call.1} parent=11 // pred_check_branch
          %341 = sbr.rel (%p339) target = $region20
        $region19: #{tpu_custom_call.1} parent=11 // pred_region
          %s343 = ssub.s32 128, 128
          %344 = vsyncadd [#allocation6], %s343
          %s346 = sshll.u32 [#allocation7], 4
          %s347 = int_to_ptr.vmem [resolvable:$true] %s346
          %349 = dma.hbm_to_vmem [thread:$0]  %s2, 128, %s347, [#allocation6]
        $region20: #{tpu_custom_call.1} parent=11 // pred_fallthru
          _
        // Predicated region
        $region21: #{tpu_custom_call.1} parent=11 // pred_check
          %p350 = pneg %p119
        $region22: #{tpu_custom_call.1} parent=11 // pred_check_branch
          %352 = sbr.rel (%p350) target = $region24
        $region23: #{tpu_custom_call.1} parent=11 // pred_region
          %s354 = ssub.s32 64, 64
          %355 = vsyncadd [#allocation9], %s354
          %s357 = sshll.u32 [#allocation8], 4
          %s358 = int_to_ptr.vmem [resolvable:$true] %s357
          %360 = dma.hbm_to_vmem [thread:$0]  %s3, 64, %s358, [#allocation9]
        $region24: #{tpu_custom_call.1} parent=11 // pred_fallthru
          _
        // Predicated region
        $region25: #{tpu_custom_call.1} parent=11 // pred_check
          %p361 = pneg %p140
        $region26: #{tpu_custom_call.1} parent=11 // pred_check_branch
          %363 = sbr.rel (%p361) target = $region28
        $region27: #{tpu_custom_call.1} parent=11 // pred_region
          %s365 = ssub.s32 128, 128
          %366 = vsyncadd [#allocation9], %s365
          %s368 = sshll.u32 [#allocation10], 4
          %s369 = int_to_ptr.vmem [resolvable:$true] %s368
          %371 = dma.hbm_to_vmem [thread:$0]  %s4, 128, %s369, [#allocation9]
        $region28: #{tpu_custom_call.1} parent=11 // pred_fallthru
          _
        // Predicated region
        $region29: #{tpu_custom_call.1} parent=11 // pred_check
          %p372 = pneg %p161
        $region30: #{tpu_custom_call.1} parent=11 // pred_check_branch
          %374 = sbr.rel (%p372) target = $region32
        $region31: #{tpu_custom_call.1} parent=11 // pred_region
          %s376 = ssub.s32 128, 128
          %377 = vsyncadd [#allocation12], %s376
          %s379 = sshll.u32 [#allocation11], 4
          %s380 = int_to_ptr.vmem [resolvable:$true] %s379
          %382 = dma.hbm_to_vmem [thread:$0]  %s5, 128, %s380, [#allocation12]
        $region32: #{tpu_custom_call.1} parent=11 // pred_fallthru
          _
        // Predicated region
        $region33: #{tpu_custom_call.1} parent=11 // pred_check
          %p383 = pneg %p182
        $region34: #{tpu_custom_call.1} parent=11 // pred_check_branch
          %385 = sbr.rel (%p383) target = $region36
        $region35: #{tpu_custom_call.1} parent=11 // pred_region
          %s387 = ssub.s32 128, 128
          %388 = vsyncadd [#allocation12], %s387
          %s390 = sshll.u32 [#allocation13], 4
          %s391 = int_to_ptr.vmem [resolvable:$true] %s390
          %393 = dma.hbm_to_vmem [thread:$0]  %s6, 128, %s391, [#allocation12]
        $region36: #{tpu_custom_call.1} parent=11 // pred_fallthru
          _
        // Predicated region
        $region37: #{tpu_custom_call.1} parent=11 // pred_check
          %p394 = pneg %p203
        $region38: #{tpu_custom_call.1} parent=11 // pred_check_branch
          %396 = sbr.rel (%p394) target = $region40
        $region39: #{tpu_custom_call.1} parent=11 // pred_region
          %s398 = ssub.s32 128, 128
          %399 = vsyncadd [#allocation15], %s398
          %s401 = sshll.u32 [#allocation14], 4
          %s402 = int_to_ptr.vmem [resolvable:$true] %s401
          %404 = dma.hbm_to_vmem [thread:$0]  %s7, 128, %s402, [#allocation15]
        $region40: #{tpu_custom_call.1} parent=11 // pred_fallthru
          _
        // Predicated region
        $region41: #{tpu_custom_call.1} parent=11 // pred_check
          %p405 = pneg %p224
        $region42: #{tpu_custom_call.1} parent=11 // pred_check_branch
          %407 = sbr.rel (%p405) target = $region44
        $region43: #{tpu_custom_call.1} parent=11 // pred_region
          %s409 = ssub.s32 128, 128
          %410 = vsyncadd [#allocation15], %s409
          %s412 = sshll.u32 [#allocation16], 4
          %s413 = int_to_ptr.vmem [resolvable:$true] %s412
          %415 = dma.hbm_to_vmem [thread:$0]  %s8, 128, %s413, [#allocation15]
        $region44: #{tpu_custom_call.1} parent=11 // pred_fallthru
          _
        // Predicated region
        $region45: #{tpu_custom_call.1} parent=11 // pred_check
          %p416 = pneg %p245
        $region46: #{tpu_custom_call.1} parent=11 // pred_check_branch
          %418 = sbr.rel (%p416) target = $region48
        $region47: #{tpu_custom_call.1} parent=11 // pred_region
          %s420 = ssub.s32 128, 128
          %421 = vsyncadd [#allocation18], %s420
          %s423 = sshll.u32 [#allocation17], 4
          %s424 = int_to_ptr.vmem [resolvable:$true] %s423
          %426 = dma.hbm_to_vmem [thread:$0]  %s9, 128, %s424, [#allocation18]
        $region48: #{tpu_custom_call.1} parent=11 // pred_fallthru
          _
        // Predicated region
        $region49: #{tpu_custom_call.1} parent=11 // pred_check
          %p427 = pneg %p266
        $region50: #{tpu_custom_call.1} parent=11 // pred_check_branch
          %429 = sbr.rel (%p427) target = $region52
        $region51: #{tpu_custom_call.1} parent=11 // pred_region
          %s431 = ssub.s32 64, 64
          %432 = vsyncadd [#allocation18], %s431
          %s434 = sshll.u32 [#allocation19], 4
          %s435 = int_to_ptr.vmem [resolvable:$true] %s434
          %437 = dma.hbm_to_vmem [thread:$0]  %s10, 64, %s435, [#allocation18]
        $region52: #{tpu_custom_call.1} parent=11 // pred_fallthru
          _
        // Predicated region
        $region53: #{tpu_custom_call.1} parent=11 // pred_check
          %p438 = pneg %p287
        $region54: #{tpu_custom_call.1} parent=11 // pred_check_branch
          %440 = sbr.rel (%p438) target = $region56
        $region55: #{tpu_custom_call.1} parent=11 // pred_region
          %s442 = ssub.s32 64, 64
          %443 = vsyncadd [#allocation21], %s442
          %s445 = sshll.u32 [#allocation20], 4
          %s446 = int_to_ptr.vmem [resolvable:$true] %s445
          %448 = dma.hbm_to_vmem [thread:$0]  %s11, 64, %s446, [#allocation21]
        $region56: #{tpu_custom_call.1} parent=11 // pred_fallthru
          _
      $region12: #{tpu_custom_call.1} parent=5 // pred_fallthru
        _
      %p449 = scmp.lt.s32.totalorder %s30, 2
      // Predicated region
      $region57: #{tpu_custom_call.1} parent=5 // pred_check
        %p450 = pneg %p449
      $region58: #{tpu_custom_call.1} parent=5 // pred_check_branch
        %452 = sbr.rel (%p450) target = $region60
      $region59: #{tpu_custom_call.1} parent=5 // pred_region
        // Predicated region
        $region61: #{tpu_custom_call.1} parent=59 // pred_check
          %p453 = pneg %p50
        $region62: #{tpu_custom_call.1} parent=59 // pred_check_branch
          %455 = sbr.rel (%p453) target = $region64
        $region63: #{tpu_custom_call.1} parent=59 // pred_region
          %s456 = sand.u32 %s40, 1
          %s457 = scalar_lea.sflag [#allocation3], %s456
          %s458 = sand.u32 %s40, 1
          %s459 = smul.addr %s458, 16
          %s460 = scalar_lea.vmem [#allocation2], %s459
          %s462 = ssub.s32 256, 256
          %463 = vsyncadd %s457, %s462
          %s464 = smul.addr %s30, 2
          %s465 = smul.addr %s464, 128
          %s466 = scalar_lea.hbm %s0, %s465
          %s468 = sshll.u32 %s460, 4
          %s469 = int_to_ptr.vmem [resolvable:$true] %s468
          %471 = dma.hbm_to_vmem [thread:$0]  %s466, 256, %s469, %s457
        $region64: #{tpu_custom_call.1} parent=59 // pred_fallthru
          _
      $region60: #{tpu_custom_call.1} parent=5 // pred_fallthru
        _
      %p472 = scmp.le.s32.totalorder 1, %s30
      %p473 = scmp.lt.s32.totalorder %s30, 3
      %p474 = pnand %p472, %p473
      %p475 = pneg %p474
      // Predicated region
      $region65: #{tpu_custom_call.1} parent=5 // pred_check
        _
      $region66: #{tpu_custom_call.1} parent=5 // pred_check_branch
        %477 = sbr.rel (%p474) target = $region68
      $region67: #{tpu_custom_call.1} parent=5 // pred_region
        %s478 = ssub.s32 %s30, 1
        %s479 = sand.u32 %s43, 1
        %s480 = scalar_lea.sflag [#allocation3], %s479
        %s481 = sand.u32 %s43, 1
        %s482 = smul.addr %s481, 16
        %s483 = scalar_lea.vmem [#allocation2], %s482
        // Predicated region
        $region69: #{tpu_custom_call.1} parent=67 // pred_check
          %p484 = pneg %p56
        $region70: #{tpu_custom_call.1} parent=67 // pred_check_branch
          %486 = sbr.rel (%p484) target = $region72
        $region71: #{tpu_custom_call.1} parent=67 // pred_region
          %487 = dma.done %s480, 256
        $region72: #{tpu_custom_call.1} parent=67 // pred_fallthru
          _
        // Predicated region
        $region73: #{tpu_custom_call.1} parent=67 // pred_check
          %p488 = pneg %p77
        $region74: #{tpu_custom_call.1} parent=67 // pred_check_branch
          %490 = sbr.rel (%p488) target = $region76
        $region75: #{tpu_custom_call.1} parent=67 // pred_region
          %491 = dma.done [#allocation6], 128
        $region76: #{tpu_custom_call.1} parent=67 // pred_fallthru
          _
        // Predicated region
        $region77: #{tpu_custom_call.1} parent=67 // pred_check
          %p492 = pneg %p98
        $region78: #{tpu_custom_call.1} parent=67 // pred_check_branch
          %494 = sbr.rel (%p492) target = $region80
        $region79: #{tpu_custom_call.1} parent=67 // pred_region
          %495 = dma.done [#allocation6], 128
        $region80: #{tpu_custom_call.1} parent=67 // pred_fallthru
          _
        // Predicated region
        $region81: #{tpu_custom_call.1} parent=67 // pred_check
          %p496 = pneg %p119
        $region82: #{tpu_custom_call.1} parent=67 // pred_check_branch
          %498 = sbr.rel (%p496) target = $region84
        $region83: #{tpu_custom_call.1} parent=67 // pred_region
          %499 = dma.done [#allocation9], 64
        $region84: #{tpu_custom_call.1} parent=67 // pred_fallthru
          _
        // Predicated region
        $region85: #{tpu_custom_call.1} parent=67 // pred_check
          %p500 = pneg %p140
        $region86: #{tpu_custom_call.1} parent=67 // pred_check_branch
          %502 = sbr.rel (%p500) target = $region88
        $region87: #{tpu_custom_call.1} parent=67 // pred_region
          %503 = dma.done [#allocation9], 128
        $region88: #{tpu_custom_call.1} parent=67 // pred_fallthru
          _
        // Predicated region
        $region89: #{tpu_custom_call.1} parent=67 // pred_check
          %p504 = pneg %p161
        $region90: #{tpu_custom_call.1} parent=67 // pred_check_branch
          %506 = sbr.rel (%p504) target = $region92
        $region91: #{tpu_custom_call.1} parent=67 // pred_region
          %507 = dma.done [#allocation12], 128
        $region92: #{tpu_custom_call.1} parent=67 // pred_fallthru
          _
        // Predicated region
        $region93: #{tpu_custom_call.1} parent=67 // pred_check
          %p508 = pneg %p182
        $region94: #{tpu_custom_call.1} parent=67 // pred_check_branch
          %510 = sbr.rel (%p508) target = $region96
        $region95: #{tpu_custom_call.1} parent=67 // pred_region
          %511 = dma.done [#allocation12], 128
        $region96: #{tpu_custom_call.1} parent=67 // pred_fallthru
          _
        // Predicated region
        $region97: #{tpu_custom_call.1} parent=67 // pred_check
          %p512 = pneg %p203
        $region98: #{tpu_custom_call.1} parent=67 // pred_check_branch
          %514 = sbr.rel (%p512) target = $region100
        $region99: #{tpu_custom_call.1} parent=67 // pred_region
          %515 = dma.done [#allocation15], 128
        $region100: #{tpu_custom_call.1} parent=67 // pred_fallthru
          _
        // Predicated region
        $region101: #{tpu_custom_call.1} parent=67 // pred_check
          %p516 = pneg %p224
        $region102: #{tpu_custom_call.1} parent=67 // pred_check_branch
          %518 = sbr.rel (%p516) target = $region104
        $region103: #{tpu_custom_call.1} parent=67 // pred_region
          %519 = dma.done [#allocation15], 128
        $region104: #{tpu_custom_call.1} parent=67 // pred_fallthru
          _
        // Predicated region
        $region105: #{tpu_custom_call.1} parent=67 // pred_check
          %p520 = pneg %p245
        $region106: #{tpu_custom_call.1} parent=67 // pred_check_branch
          %522 = sbr.rel (%p520) target = $region108
        $region107: #{tpu_custom_call.1} parent=67 // pred_region
          %523 = dma.done [#allocation18], 128
        $region108: #{tpu_custom_call.1} parent=67 // pred_fallthru
          _
        // Predicated region
        $region109: #{tpu_custom_call.1} parent=67 // pred_check
          %p524 = pneg %p266
        $region110: #{tpu_custom_call.1} parent=67 // pred_check_branch
          %526 = sbr.rel (%p524) target = $region112
        $region111: #{tpu_custom_call.1} parent=67 // pred_region
          %527 = dma.done [#allocation18], 64
        $region112: #{tpu_custom_call.1} parent=67 // pred_fallthru
          _
        // Predicated region
        $region113: #{tpu_custom_call.1} parent=67 // pred_check
          %p528 = pneg %p287
        $region114: #{tpu_custom_call.1} parent=67 // pred_check_branch
          %530 = sbr.rel (%p528) target = $region116
        $region115: #{tpu_custom_call.1} parent=67 // pred_region
          %531 = dma.done [#allocation21], 64
        $region116: #{tpu_custom_call.1} parent=67 // pred_fallthru
          _
        %s532 = sand.u32 %s43, 1
        %s533 = scalar_lea.sflag [#allocation3], %s532
        %s534 = sand.u32 %s43, 1
        %s535 = smul.addr %s534, 16
        %s536 = scalar_lea.vmem [#allocation2], %s535
        %p537 = pneg %p56
        %p538 = pneg %p53
        %p539 = pneg %p77
        %p540 = pneg %p74
        %p541 = pneg %p98
        %p542 = pneg %p95
        %p543 = pneg %p119
        %p544 = pneg %p116
        %p545 = pneg %p140
        %p546 = pneg %p137
        %p547 = pneg %p161
        %p548 = pneg %p158
        %p549 = pneg %p182
        %p550 = pneg %p179
        %p551 = pneg %p203
        %p552 = pneg %p200
        %p553 = pneg %p224
        %p554 = pneg %p221
        %p555 = pneg %p245
        %p556 = pneg %p242
        %p557 = pneg %p266
        %p558 = pneg %p263
        %p559 = pneg %p287
        %p560 = pneg %p284
        %p561 = pneg %p313
        %p562 = pneg %p310
        %s563 = sand.u32 %s300, 1
        %s564 = scalar_lea.sflag [#allocation4], %s563
        %s565 = sand.u32 %s300, 1
        %s566 = smul.addr %s565, 16
        %s567 = scalar_lea.vmem [#allocation22], %s566
        %v569 = vld [vmem:[%s483] sm:$0xff]
        %v570 = vld [vmem:[%s483 + $0x8] sm:$0xff]
        %v571 = vld [vmem:[#allocation5] sm:$0xff]
        %573 = vset.pattern.permute.xlu0 0
        %574 = vperm.xlu0 %573, %v571
        %v575 = vpop.permute.xlu0 %574
        %v577 = vmul.f32 %v569, %v575
        %v578 = vmul.f32 %v570, %v575
        %v579 = vld [vmem:[#allocation7] sm:$0xff]
        %581 = vset.pattern.permute.xlu0 0
        %582 = vperm.xlu0 %581, %v579
        %v583 = vpop.permute.xlu0 %582
        %v585 = vadd.f32 %v577, %v583
        %v586 = vadd.f32 %v578, %v583
        %v587 = vmax.f32 %v585, 0.0
        %v588 = vmax.f32 %v586, 0.0
        %v589 = vpack.c.bf16 %v587, %v587
        %v590 = vpack.c.bf16 %v588, %v588
        %v591 = vld [vmem:[#allocation8] sm:$0xf]
        %vm592 = vcmask 64512
        %v594 = vsel %vm592, %v591, 0
        %vm596 = vcmask 1043456
        %v598 = vsel %vm596, %v589, 0
        %v601 = vsel %vm596, %v590, 0
        %603 = vmatprep.subr.bf16.mxu0 %v601
        %604 = vmatpush1.bf16.msra.mxu0 %v598
        %605 = vmatprep.subr.bf16.mxu0 0
        %606 = vmatpush1.bf16.msra.mxu0 0
        %607 = vmatprep.subr.bf16.mxu0 0
        %608 = vmatpush1.bf16.msra.mxu0 0
        %609 = vmatprep.subr.bf16.mxu0 0
        %610 = vmatpush1.bf16.msra.mxu0 0
        %611 = vmatprep.subr.bf16.mxu0 0
        %612 = vmatpush1.bf16.msra.mxu0 0
        %613 = vmatprep.subr.bf16.mxu0 0
        %614 = vmatpush1.bf16.msra.mxu0 0
        %615 = vmatprep.subr.bf16.mxu0 0
        %616 = vmatpush1.bf16.msra.mxu0 0
        %617 = vmatprep.subr.bf16.mxu0 0
        %618 = vmatpush1.bf16.msra.mxu0 0
        %619 = vmatprep.subr.bf16.mxu0 0
        %620 = vmatpush1.bf16.msra.mxu0 0
        %621 = vmatprep.subr.bf16.mxu0 0
        %622 = vmatpush1.bf16.msra.mxu0 0
        %623 = vmatprep.subr.bf16.mxu0 0
        %624 = vmatpush1.bf16.msra.mxu0 0
        %625 = vmatprep.subr.bf16.mxu0 0
        %626 = vmatpush1.bf16.msra.mxu0 0
        %627 = vmatprep.subr.bf16.mxu0 0
        %628 = vmatpush1.bf16.msra.mxu0 0
        %629 = vmatprep.subr.bf16.mxu0 0
        %630 = vmatpush1.bf16.msra.mxu0 0
        %631 = vmatprep.subr.bf16.mxu0 0
        %632 = vmatpush1.bf16.msra.mxu0 0
        %633 = vmatprep.subr.bf16.mxu0 0
        %634 = vmatpush1.bf16.msra.mxu0 0
        %635 = vmatprep.mubr.bf16.mxu0 0
        %636 = vmatmul.mubr.bf16.gmra.mrb[0].mxu0 %v594
        %v637 = vpop.f32.mrb[0].mxu0
        %v638 = vadd.f32 0.0, %v637
        %v639 = vpop.f32.mrb[0].mxu0
        %v640 = vadd.f32 0.0, %v639
        %v641 = vpop.f32.mrb[0].mxu0
        %v642 = vpop.f32.mrb[0].mxu0
        %643 = vdwg.mxu0
        %v644 = vmax.f32 %v638, 0.0
        %v645 = vmax.f32 %v640, 0.0
        %v646 = vld [vmem:[#allocation10] sm:$0xff]
        %648 = vset.pattern.permute.xlu0 0
        %649 = vperm.xlu0 %648, %v646
        %v650 = vpop.permute.xlu0 %649
        %v652 = vmul.f32 %v644, %v650
        %v653 = vmul.f32 %v645, %v650
        %v654 = vld [vmem:[#allocation11] sm:$0xff]
        %656 = vset.pattern.permute.xlu0 0
        %657 = vperm.xlu0 %656, %v654
        %v658 = vpop.permute.xlu0 %657
        %v660 = vadd.f32 %v652, %v658
        %v661 = vadd.f32 %v653, %v658
        %v662 = vld [vmem:[#allocation13] sm:$0xff]
        %v663 = vld [vmem:[#allocation16] sm:$0x77]
        %664 = vrot.lane.b32.xlu0 %v660, 16
        %v665 = vpop.permute.xlu0 %664
        %666 = vrot.lane.b32.xlu0 %v661, 16
        %v667 = vpop.permute.xlu0 %666
        %v668 = vlaneseq
        %v669 = vand.u32 %v668, 127
        %vm670 = vcmp.lt.s32.totalorder %v669, 16
        %v671 = vsel %vm670, %v665, %v667
        %v672 = vsel %vm670, %v667, %v665
        %v674 = vlaneseq
        %v675 = vshrl.u32 %v674, 7
        %v676 = vsub.s32 0, %v675
        %v677 = vrot.slane %v663, %v676
        %v678 = vlaneseq
        %v679 = vshrl.u32 %v678, 7
        %v680 = vsub.s32 4, %v679
        %v681 = vrot.slane %v663, %v680
        %v684 = vlaneseq
        %v685 = vshrl.u32 %v684, 7
        %v686 = vsub.s32 0, %v685
        %v687 = vrot.slane %v677, %v686
        %v688 = vlaneseq
        %v689 = vshrl.u32 %v688, 7
        %v690 = vsub.s32 0, %v689
        %v691 = vrot.slane %v681, %v690
        %v692 = vmul.f32 %v687, %v672
        %v693 = vmul.f32 %v691, %v671
        %695 = vset.pattern.permute.xlu0 0
        %696 = vperm.xlu0 %695, %v662
        %v697 = vpop.permute.xlu0 %696
        %v699 = vmul.f32 %v697, %v692
        %v700 = vmul.f32 %v697, %v693
        %701 = vset.pattern.permute.xlu0 1
        %702 = vperm.xlu0 %701, %v662
        %v703 = vpop.permute.xlu0 %702
        %v705 = vmul.f32 %v703, %v660
        %v706 = vmul.f32 %v703, %v661
        %v707 = vadd.f32 %v699, %v705
        %v708 = vadd.f32 %v700, %v706
        %709 = vrot.lane.b32.xlu0 %v660, 112
        %v710 = vpop.permute.xlu0 %709
        %711 = vrot.lane.b32.xlu0 %v661, 112
        %v712 = vpop.permute.xlu0 %711
        %vm713 = vcmp.lt.s32.totalorder %v669, 112
        %v714 = vsel %vm713, %v710, %v712
        %v715 = vsel %vm713, %v712, %v710
        %v716 = vlaneseq
        %v717 = vshrl.u32 %v716, 7
        %v718 = vsub.s32 2, %v717
        %v719 = vrot.slane %v663, %v718
        %v720 = vlaneseq
        %v721 = vshrl.u32 %v720, 7
        %v722 = vsub.s32 6, %v721
        %v723 = vrot.slane %v663, %v722
        %v726 = vlaneseq
        %v727 = vshrl.u32 %v726, 7
        %v728 = vsub.s32 2, %v727
        %v729 = vrot.slane %v719, %v728
        %v730 = vlaneseq
        %v731 = vshrl.u32 %v730, 7
        %v732 = vsub.s32 2, %v731
        %v733 = vrot.slane %v723, %v732
        %v734 = vmul.f32 %v729, %v714
        %v735 = vmul.f32 %v733, %v715
        %736 = vset.pattern.permute.xlu0 2
        %737 = vperm.xlu0 %736, %v662
        %v738 = vpop.permute.xlu0 %737
        %v740 = vmul.f32 %v738, %v734
        %v741 = vmul.f32 %v738, %v735
        %v742 = vadd.f32 %v707, %v740
        %v743 = vadd.f32 %v708, %v741
        %v744 = vld [vmem:[#allocation14] sm:$0xff]
        %v745 = vld [vmem:[#allocation17] sm:$0x77]
        %746 = vrot.lane.b32.xlu0 %v742, 1
        %v747 = vpop.permute.xlu0 %746
        %748 = vrot.lane.b32.xlu0 %v743, 1
        %v749 = vpop.permute.xlu0 %748
        %vm750 = vcmp.lt.s32.totalorder %v669, 1
        %v751 = vsel %vm750, %v747, %v749
        %v752 = vsel %vm750, %v749, %v747
        %v754 = vlaneseq
        %v755 = vshrl.u32 %v754, 7
        %v756 = vsub.s32 0, %v755
        %v757 = vrot.slane %v745, %v756
        %v758 = vlaneseq
        %v759 = vshrl.u32 %v758, 7
        %v760 = vsub.s32 4, %v759
        %v761 = vrot.slane %v745, %v760
        %v764 = vlaneseq
        %v765 = vshrl.u32 %v764, 7
        %v766 = vsub.s32 0, %v765
        %v767 = vrot.slane %v757, %v766
        %v768 = vlaneseq
        %v769 = vshrl.u32 %v768, 7
        %v770 = vsub.s32 0, %v769
        %v771 = vrot.slane %v761, %v770
        %v772 = vmul.f32 %v767, %v752
        %v773 = vmul.f32 %v771, %v751
        %775 = vset.pattern.permute.xlu0 0
        %776 = vperm.xlu0 %775, %v744
        %v777 = vpop.permute.xlu0 %776
        %v779 = vmul.f32 %v777, %v772
        %v780 = vmul.f32 %v777, %v773
        %781 = vset.pattern.permute.xlu0 1
        %782 = vperm.xlu0 %781, %v744
        %v783 = vpop.permute.xlu0 %782
        %v785 = vmul.f32 %v783, %v742
        %v786 = vmul.f32 %v783, %v743
        %v787 = vadd.f32 %v779, %v785
        %v788 = vadd.f32 %v780, %v786
        %789 = vrot.lane.b32.xlu0 %v742, 127
        %v790 = vpop.permute.xlu0 %789
        %791 = vrot.lane.b32.xlu0 %v743, 127
        %v792 = vpop.permute.xlu0 %791
        %vm793 = vcmp.lt.s32.totalorder %v669, 127
        %v794 = vsel %vm793, %v790, %v792
        %v795 = vsel %vm793, %v792, %v790
        %v796 = vlaneseq
        %v797 = vshrl.u32 %v796, 7
        %v798 = vsub.s32 2, %v797
        %v799 = vrot.slane %v745, %v798
        %v800 = vlaneseq
        %v801 = vshrl.u32 %v800, 7
        %v802 = vsub.s32 6, %v801
        %v803 = vrot.slane %v745, %v802
        %v806 = vlaneseq
        %v807 = vshrl.u32 %v806, 7
        %v808 = vsub.s32 2, %v807
        %v809 = vrot.slane %v799, %v808
        %v810 = vlaneseq
        %v811 = vshrl.u32 %v810, 7
        %v812 = vsub.s32 2, %v811
        %v813 = vrot.slane %v803, %v812
        %v814 = vmul.f32 %v809, %v794
        %v815 = vmul.f32 %v813, %v795
        %816 = vset.pattern.permute.xlu0 2
        %817 = vperm.xlu0 %816, %v744
        %v818 = vpop.permute.xlu0 %817
        %v820 = vmul.f32 %v818, %v814
        %v821 = vmul.f32 %v818, %v815
        %v822 = vadd.f32 %v787, %v820
        %v823 = vadd.f32 %v788, %v821
        %v824 = vpack.c.bf16 %v822, %v822
        %v825 = vpack.c.bf16 %v823, %v823
        %v826 = vld [vmem:[#allocation19] sm:$0xf]
        %v827 = vld [vmem:[#allocation20] sm:$0xf]
        %v828 = vpack.c.bf16 %v569, %v569
        %v829 = vpack.c.bf16 %v570, %v570
        %v831 = vsel %vm592, %v827, 0
        %v834 = vsel %vm596, %v828, 0
        %v837 = vsel %vm596, %v829, 0
        %839 = vmatprep.subr.bf16.mxu0 %v837
        %840 = vmatpush1.bf16.msra.mxu0 %v834
        %841 = vmatprep.subr.bf16.mxu0 0
        %842 = vmatpush1.bf16.msra.mxu0 0
        %843 = vmatprep.subr.bf16.mxu0 0
        %844 = vmatpush1.bf16.msra.mxu0 0
        %845 = vmatprep.subr.bf16.mxu0 0
        %846 = vmatpush1.bf16.msra.mxu0 0
        %847 = vmatprep.subr.bf16.mxu0 0
        %848 = vmatpush1.bf16.msra.mxu0 0
        %849 = vmatprep.subr.bf16.mxu0 0
        %850 = vmatpush1.bf16.msra.mxu0 0
        %851 = vmatprep.subr.bf16.mxu0 0
        %852 = vmatpush1.bf16.msra.mxu0 0
        %853 = vmatprep.subr.bf16.mxu0 0
        %854 = vmatpush1.bf16.msra.mxu0 0
        %855 = vmatprep.subr.bf16.mxu0 0
        %856 = vmatpush1.bf16.msra.mxu0 0
        %857 = vmatprep.subr.bf16.mxu0 0
        %858 = vmatpush1.bf16.msra.mxu0 0
        %859 = vmatprep.subr.bf16.mxu0 0
        %860 = vmatpush1.bf16.msra.mxu0 0
        %861 = vmatprep.subr.bf16.mxu0 0
        %862 = vmatpush1.bf16.msra.mxu0 0
        %863 = vmatprep.subr.bf16.mxu0 0
        %864 = vmatpush1.bf16.msra.mxu0 0
        %865 = vmatprep.subr.bf16.mxu0 0
        %866 = vmatpush1.bf16.msra.mxu0 0
        %867 = vmatprep.subr.bf16.mxu0 0
        %868 = vmatpush1.bf16.msra.mxu0 0
        %869 = vmatprep.subr.bf16.mxu0 0
        %870 = vmatpush1.bf16.msra.mxu0 0
        %871 = vmatprep.mubr.bf16.mxu0 0
        %872 = vmatmul.mubr.bf16.gmra.mrb[0].mxu0 %v831
        %v873 = vpop.f32.mrb[0].mxu0
        %v874 = vadd.f32 0.0, %v873
        %v875 = vpop.f32.mrb[0].mxu0
        %v876 = vadd.f32 0.0, %v875
        %v877 = vpop.f32.mrb[0].mxu0
        %v878 = vpop.f32.mrb[0].mxu0
        %879 = vdwg.mxu0
        %v881 = vsel %vm592, %v826, 0
        %v884 = vsel %vm596, %v824, 0
        %v887 = vsel %vm596, %v825, 0
        %889 = vmatprep.subr.bf16.mxu0 %v887
        %890 = vmatpush1.bf16.msra.mxu0 %v884
        %891 = vmatprep.subr.bf16.mxu0 0
        %892 = vmatpush1.bf16.msra.mxu0 0
        %893 = vmatprep.subr.bf16.mxu0 0
        %894 = vmatpush1.bf16.msra.mxu0 0
        %895 = vmatprep.subr.bf16.mxu0 0
        %896 = vmatpush1.bf16.msra.mxu0 0
        %897 = vmatprep.subr.bf16.mxu0 0
        %898 = vmatpush1.bf16.msra.mxu0 0
        %899 = vmatprep.subr.bf16.mxu0 0
        %900 = vmatpush1.bf16.msra.mxu0 0
        %901 = vmatprep.subr.bf16.mxu0 0
        %902 = vmatpush1.bf16.msra.mxu0 0
        %903 = vmatprep.subr.bf16.mxu0 0
        %904 = vmatpush1.bf16.msra.mxu0 0
        %905 = vmatprep.subr.bf16.mxu0 0
        %906 = vmatpush1.bf16.msra.mxu0 0
        %907 = vmatprep.subr.bf16.mxu0 0
        %908 = vmatpush1.bf16.msra.mxu0 0
        %909 = vmatprep.subr.bf16.mxu0 0
        %910 = vmatpush1.bf16.msra.mxu0 0
        %911 = vmatprep.subr.bf16.mxu0 0
        %912 = vmatpush1.bf16.msra.mxu0 0
        %913 = vmatprep.subr.bf16.mxu0 0
        %914 = vmatpush1.bf16.msra.mxu0 0
        %915 = vmatprep.subr.bf16.mxu0 0
        %916 = vmatpush1.bf16.msra.mxu0 0
        %917 = vmatprep.subr.bf16.mxu0 0
        %918 = vmatpush1.bf16.msra.mxu0 0
        %919 = vmatprep.subr.bf16.mxu0 0
        %920 = vmatpush1.bf16.msra.mxu0 0
        %921 = vmatprep.mubr.bf16.mxu0 0
        %922 = vmatmul.mubr.bf16.gmra.mrb[0].mxu0 %v881
        %v923 = vpop.f32.mrb[0].mxu0
        %v924 = vadd.f32 %v874, %v923
        %v925 = vpop.f32.mrb[0].mxu0
        %v926 = vadd.f32 %v876, %v925
        %v927 = vpop.f32.mrb[0].mxu0
        %v928 = vpop.f32.mrb[0].mxu0
        %929 = vdwg.mxu0
        %930 = vst [vmem:[%s567] sm:$0xff] %v924
        %931 = vst [vmem:[%s567 + $0x8] sm:$0xff] %v926
        %s932 = sand.u32 %s300, 1
        %s933 = scalar_lea.sflag [#allocation4], %s932
        %s934 = sand.u32 %s300, 1
        %s935 = smul.addr %s934, 16
        %s936 = scalar_lea.vmem [#allocation22], %s935
        // Predicated region
        $region117: #{tpu_custom_call.1} parent=67 // pred_check
          %p937 = pneg %p310
        $region118: #{tpu_custom_call.1} parent=67 // pred_check_branch
          %939 = sbr.rel (%p937) target = $region120
        $region119: #{tpu_custom_call.1} parent=67 // pred_region
          %s941 = ssub.s32 256, 256
          %942 = vsyncadd %s933, %s941
          %s943 = smul.addr %s35, 2
          %s944 = smul.addr %s943, 128
          %s945 = scalar_lea.hbm %s12, %s944
          %s947 = sshll.u32 %s936, 4
          %s948 = int_to_ptr.vmem [resolvable:$true] %s947
          %950 = dma.vmem_to_hbm [thread:$0]  %s948, 256, %s945, %s933
        $region120: #{tpu_custom_call.1} parent=67 // pred_fallthru
          _
      $region68: #{tpu_custom_call.1} parent=5 // pred_fallthru
        _
      %p951 = scmp.le.s32.totalorder 2, %s30
      // Predicated region
      $region121: #{tpu_custom_call.1} parent=5 // pred_check
        %p952 = pneg %p951
      $region122: #{tpu_custom_call.1} parent=5 // pred_check_branch
        %954 = sbr.rel (%p952) target = $region124
      $region123: #{tpu_custom_call.1} parent=5 // pred_region
        %s955 = ssub.s32 %s30, 2
        // Predicated region
        $region125: #{tpu_custom_call.1} parent=123 // pred_check
          %p956 = pneg %p316
        $region126: #{tpu_custom_call.1} parent=123 // pred_check_branch
          %958 = sbr.rel (%p956) target = $region128
        $region127: #{tpu_custom_call.1} parent=123 // pred_region
          %s959 = sand.u32 %s301, 1
          %s960 = scalar_lea.sflag [#allocation4], %s959
          %s961 = sand.u32 %s301, 1
          %s962 = smul.addr %s961, 16
          %s963 = scalar_lea.vmem [#allocation22], %s962
          %964 = dma.done %s960, 256
        $region128: #{tpu_custom_call.1} parent=123 // pred_fallthru
          _
      $region124: #{tpu_custom_call.1} parent=5 // pred_fallthru
        _
    $region6: #{tpu_custom_call.1} parent=1 // loop_footer
      %s34 = sadd.s32 1, %s30
    $region7: #{tpu_custom_call.1} parent=1 // loop_footer_branch
      %29 = sbr.rel target = $region3
    $region8: #{tpu_custom_call.1} parent=1 // loop_exit
      _
    %965 = vsyncpa [#allocation3], 1
    %s966 = scalar_lea.sflag [#allocation3], 1
    %967 = vsyncpa %s966, 1
    %968 = vsyncpa [#allocation6], 1
    %969 = vsyncpa [#allocation9], 1
    %970 = vsyncpa [#allocation12], 1
    %971 = vsyncpa [#allocation15], 1
    %972 = vsyncpa [#allocation18], 1
    %973 = vsyncpa [#allocation21], 1
    %974 = vsyncpa [#allocation4], 1
    %s975 = scalar_lea.sflag [#allocation4], 1
    %976 = vsyncpa %s975, 1

// kernel: tpu_custom_call.1
$region0: #{tpu_custom_call.1}
  #allocation0 [shape = 'u32[]', space=smem, size = 0x4, offset = 0x4, fixed_abs, tag = 'smem constant byte address 0x4 - core index']
  #allocation1 [shape = 'u32[144,128]{1,0:T(1,128)}', space=vmem, size = 0x12000, scoped, tag = 'internal scratch']
  %s0 = inlined_call_operand.hbm [shape: f32[2,8,256], index: 0, kind: input, shape index: {}]
  %s1 = inlined_call_operand.hbm [shape: f32[8,1], index: 1, kind: input, shape index: {}]
  %s2 = inlined_call_operand.hbm [shape: f32[8,1], index: 2, kind: input, shape index: {}]
  %s3 = inlined_call_operand.hbm [shape: bf16[8,8], index: 3, kind: input, shape index: {}]
  %s4 = inlined_call_operand.hbm [shape: f32[8,1], index: 4, kind: input, shape index: {}]
  %s5 = inlined_call_operand.hbm [shape: f32[8,1], index: 5, kind: input, shape index: {}]
  %s6 = inlined_call_operand.hbm [shape: f32[8,3], index: 6, kind: input, shape index: {}]
  %s7 = inlined_call_operand.hbm [shape: f32[8,3], index: 7, kind: input, shape index: {}]
  %s8 = inlined_call_operand.hbm [shape: f32[3,256], index: 8, kind: input, shape index: {}]
  %s9 = inlined_call_operand.hbm [shape: f32[3,256], index: 9, kind: input, shape index: {}]
  %s10 = inlined_call_operand.hbm [shape: bf16[8,8], index: 10, kind: input, shape index: {}]
  %s11 = inlined_call_operand.hbm [shape: bf16[8,8], index: 11, kind: input, shape index: {}]
  %s12 = inlined_call_operand.hbm [shape: f32[2,8,256], index: 12, kind: output, shape index: {}]
  %s13 = sld [smem:[#allocation0]]
  $region129: #{tpu_custom_call.1} parent=0
    _
  %s15 = ssub.s32 1, %s13
  %s16 = scalar_select 0, %s15, %s13
  $region1: #{tpu_custom_call.1} parent=0
    #allocation2 [shape = 'u8[16384]{0}', space=vmem, size = 0x4000, scoped, tag = 'input window, operand 0']
    #allocation3 [shape = 's32[2]{0}', space=sflag, size = 0x8, scoped, tag = 'scoped memory for tpu_custom_call.1']
    #allocation4 [shape = 's32[2]{0}', space=sflag, size = 0x8, scoped, tag = 'scoped memory for tpu_custom_call.1']
    #allocation5 [shape = 'u8[4096]{0}', space=vmem, size = 0x1000, scoped, tag = 'input window, operand 1, single buffered']
    #allocation6 [shape = 's32[1]{0}', space=sflag, size = 0x4, scoped, tag = 'scoped memory for tpu_custom_call.1']
    #allocation7 [shape = 'u8[4096]{0}', space=vmem, size = 0x1000, scoped, tag = 'input window, operand 2, single buffered']
    #allocation8 [shape = 'u8[2048]{0}', space=vmem, size = 0x800, scoped, tag = 'input window, operand 3, single buffered']
    #allocation9 [shape = 's32[1]{0}', space=sflag, size = 0x4, scoped, tag = 'scoped memory for tpu_custom_call.1']
    #allocation10 [shape = 'u8[4096]{0}', space=vmem, size = 0x1000, scoped, tag = 'input window, operand 4, single buffered']
    #allocation11 [shape = 'u8[4096]{0}', space=vmem, size = 0x1000, scoped, tag = 'input window, operand 5, single buffered']
    #allocation12 [shape = 's32[1]{0}', space=sflag, size = 0x4, scoped, tag = 'scoped memory for tpu_custom_call.1']
    #allocation13 [shape = 'u8[4096]{0}', space=vmem, size = 0x1000, scoped, tag = 'input window, operand 6, single buffered']
    #allocation14 [shape = 'u8[4096]{0}', space=vmem, size = 0x1000, scoped, tag = 'input window, operand 7, single buffered']
    #allocation15 [shape = 's32[1]{0}', space=sflag, size = 0x4, scoped, tag = 'scoped memory for tpu_custom_call.1']
    #allocation16 [shape = 'u8[4096]{0}', space=vmem, size = 0x1000, scoped, tag = 'input window, operand 8, single buffered']
    #allocation17 [shape = 'u8[4096]{0}', space=vmem, size = 0x1000, scoped, tag = 'input window, operand 9, single buffered']
    #allocation18 [shape = 's32[1]{0}', space=sflag, size = 0x4, scoped, tag = 'scoped memory for tpu_custom_call.1']
    #allocation19 [shape = 'u8[2048]{0}', space=vmem, size = 0x800, scoped, tag = 'input window, operand 10, single buffered']
    #allocation20 [shape = 'u8[2048]{0}', space=vmem, size = 0x800, scoped, tag = 'input window, operand 11, single buffered']
    #allocation21 [shape = 's32[1]{0}', space=sflag, size = 0x4, scoped, tag = 'scoped memory for tpu_custom_call.1']
    #allocation22 [shape = 'u8[16384]{0}', space=vmem, size = 0x4000, scoped, tag = 'output window, operand 0']
    %17 = vsyncpa [#allocation3], 0
    %s18 = scalar_lea.sflag [#allocation3], 1
    %19 = vsyncpa %s18, 0
    %20 = vsyncpa [#allocation6], 0
    %21 = vsyncpa [#allocation9], 0
    %22 = vsyncpa [#allocation12], 0
    %23 = vsyncpa [#allocation15], 0
    %24 = vsyncpa [#allocation18], 0
    %25 = vsyncpa [#allocation21], 0
    %26 = vsyncpa [#allocation4], 0
    %s27 = scalar_lea.sflag [#allocation4], 1
    %28 = vsyncpa %s27, 0
    loop: start=0, step=1, limit=4
    $region2: #{tpu_custom_call.1} parent=1 // loop_pre_header
      _
    $region3: #{tpu_custom_call.1} parent=1 // loop_header
      %s30 = sphi 0, %s34
      %p31 = scmp.ge.s32.totalorder %s30, 4
      %s40 = sphi 0, %s42
      %s43 = sphi 0, %s40
      %s44 = sphi 0, %s43
      %s60 = sphi 0, %s44
      %s64 = sphi 0, %s64
      %s66 = sphi 0, %s64
      %s67 = sphi 0, %s66
      %s81 = sphi 0, %s67
      %s85 = sphi 0, %s85
      %s87 = sphi 0, %s85
      %s88 = sphi 0, %s87
      %s102 = sphi 0, %s88
      %s106 = sphi 0, %s106
      %s108 = sphi 0, %s106
      %s109 = sphi 0, %s108
      %s123 = sphi 0, %s109
      %s127 = sphi 0, %s127
      %s129 = sphi 0, %s127
      %s130 = sphi 0, %s129
      %s144 = sphi 0, %s130
      %s148 = sphi 0, %s148
      %s150 = sphi 0, %s148
      %s151 = sphi 0, %s150
      %s165 = sphi 0, %s151
      %s169 = sphi 0, %s169
      %s171 = sphi 0, %s169
      %s172 = sphi 0, %s171
      %s186 = sphi 0, %s172
      %s190 = sphi 0, %s190
      %s192 = sphi 0, %s190
      %s193 = sphi 0, %s192
      %s207 = sphi 0, %s193
      %s211 = sphi 0, %s211
      %s213 = sphi 0, %s211
      %s214 = sphi 0, %s213
      %s228 = sphi 0, %s214
      %s232 = sphi 0, %s232
      %s234 = sphi 0, %s232
      %s235 = sphi 0, %s234
      %s249 = sphi 0, %s235
      %s253 = sphi 0, %s253
      %s255 = sphi 0, %s253
      %s256 = sphi 0, %s255
      %s270 = sphi 0, %s256
      %s274 = sphi 0, %s274
      %s276 = sphi 0, %s274
      %s277 = sphi 0, %s276
      %s291 = sphi 0, %s277
      %s297 = sphi 0, %s299
      %s300 = sphi 0, %s297
      %s301 = sphi 0, %s300
      %s317 = sphi 0, %s301
    $region4: #{tpu_custom_call.1} parent=1 // loop_header_branch
      %33 = sbr.rel (%p31) target = $region8
    $region5: #{tpu_custom_call.1} parent=1 // loop_body
      %s35 = ssub.s32 %s30, 1
      %s36 = ssub.s32 %s30, 2
      %s37 = sadd.s32 %s30, 1
      %s38 = ssub.s32 %s30, %s37
      %p39 = scmp.eq.s32.totalorder %s38, 0
      %s41 = sadd.s32 %s40, 1
      %s42 = scalar_select %p39, %s40, %s41
      %p45 = pneg %p39
      %p46 = scmp.eq.s32.totalorder %s30, 1
      %p47 = por %p45, %p46
      %p48 = scmp.ne.s32.totalorder %s40, %s43
      %p49 = scmp.eq.s32.totalorder %s30, 0
      %p50 = por %p48, %p49
      %p51 = scmp.ne.s32.totalorder %s40, %s43
      %p52 = scmp.eq.s32.totalorder %s35, 1
      %p53 = por %p51, %p52
      %p54 = scmp.ne.s32.totalorder %s43, %s44
      %p55 = scmp.eq.s32.totalorder %s35, 0
      %p56 = por %p54, %p55
      %p57 = scmp.ne.s32.totalorder %s43, %s44
      %p58 = scmp.eq.s32.totalorder %s36, 1
      %p59 = por %p57, %p58
      %p61 = scmp.ne.s32.totalorder %s44, %s60
      %p62 = scmp.eq.s32.totalorder %s36, 0
      %p63 = por %p61, %p62
      %s65 = sadd.s32 %s64, 1
      %p68 = scmp.eq.s32.totalorder %s30, 1
      %p69 = scmp.ne.s32.totalorder %s64, %s66
      %p70 = scmp.eq.s32.totalorder %s30, 0
      %p71 = por %p69, %p70
      %p72 = scmp.ne.s32.totalorder %s64, %s66
      %p73 = scmp.eq.s32.totalorder %s35, 1
      %p74 = por %p72, %p73
      %p75 = scmp.ne.s32.totalorder %s66, %s67
      %p76 = scmp.eq.s32.totalorder %s35, 0
      %p77 = por %p75, %p76
      %p78 = scmp.ne.s32.totalorder %s66, %s67
      %p79 = scmp.eq.s32.totalorder %s36, 1
      %p80 = por %p78, %p79
      %p82 = scmp.ne.s32.totalorder %s67, %s81
      %p83 = scmp.eq.s32.totalorder %s36, 0
      %p84 = por %p82, %p83
      %s86 = sadd.s32 %s85, 1
      %p89 = scmp.eq.s32.totalorder %s30, 1
      %p90 = scmp.ne.s32.totalorder %s85, %s87
      %p91 = scmp.eq.s32.totalorder %s30, 0
      %p92 = por %p90, %p91
      %p93 = scmp.ne.s32.totalorder %s85, %s87
      %p94 = scmp.eq.s32.totalorder %s35, 1
      %p95 = por %p93, %p94
      %p96 = scmp.ne.s32.totalorder %s87, %s88
      %p97 = scmp.eq.s32.totalorder %s35, 0
      %p98 = por %p96, %p97
      %p99 = scmp.ne.s32.totalorder %s87, %s88
      %p100 = scmp.eq.s32.totalorder %s36, 1
      %p101 = por %p99, %p100
      %p103 = scmp.ne.s32.totalorder %s88, %s102
      %p104 = scmp.eq.s32.totalorder %s36, 0
      %p105 = por %p103, %p104
      %s107 = sadd.s32 %s106, 1
      %p110 = scmp.eq.s32.totalorder %s30, 1
      %p111 = scmp.ne.s32.totalorder %s106, %s108
      %p112 = scmp.eq.s32.totalorder %s30, 0
      %p113 = por %p111, %p112
      %p114 = scmp.ne.s32.totalorder %s106, %s108
      %p115 = scmp.eq.s32.totalorder %s35, 1
      %p116 = por %p114, %p115
      %p117 = scmp.ne.s32.totalorder %s108, %s109
      %p118 = scmp.eq.s32.totalorder %s35, 0
      %p119 = por %p117, %p118
      %p120 = scmp.ne.s32.totalorder %s108, %s109
      %p121 = scmp.eq.s32.totalorder %s36, 1
      %p122 = por %p120, %p121
      %p124 = scmp.ne.s32.totalorder %s109, %s123
      %p125 = scmp.eq.s32.totalorder %s36, 0
      %p126 = por %p124, %p125
      %s128 = sadd.s32 %s127, 1
      %p131 = scmp.eq.s32.totalorder %s30, 1
      %p132 = scmp.ne.s32.totalorder %s127, %s129
      %p133 = scmp.eq.s32.totalorder %s30, 0
      %p134 = por %p132, %p133
      %p135 = scmp.ne.s32.totalorder %s127, %s129
      %p136 = scmp.eq.s32.totalorder %s35, 1
      %p137 = por %p135, %p136
      %p138 = scmp.ne.s32.totalorder %s129, %s130
      %p139 = scmp.eq.s32.totalorder %s35, 0
      %p140 = por %p138, %p139
      %p141 = scmp.ne.s32.totalorder %s129, %s130
      %p142 = scmp.eq.s32.totalorder %s36, 1
      %p143 = por %p141, %p142
      %p145 = scmp.ne.s32.totalorder %s130, %s144
      %p146 = scmp.eq.s32.totalorder %s36, 0
      %p147 = por %p145, %p146
      %s149 = sadd.s32 %s148, 1
      %p152 = scmp.eq.s32.totalorder %s30, 1
      %p153 = scmp.ne.s32.totalorder %s148, %s150
      %p154 = scmp.eq.s32.totalorder %s30, 0
      %p155 = por %p153, %p154
      %p156 = scmp.ne.s32.totalorder %s148, %s150
      %p157 = scmp.eq.s32.totalorder %s35, 1
      %p158 = por %p156, %p157
      %p159 = scmp.ne.s32.totalorder %s150, %s151
      %p160 = scmp.eq.s32.totalorder %s35, 0
      %p161 = por %p159, %p160
      %p162 = scmp.ne.s32.totalorder %s150, %s151
      %p163 = scmp.eq.s32.totalorder %s36, 1
      %p164 = por %p162, %p163
      %p166 = scmp.ne.s32.totalorder %s151, %s165
      %p167 = scmp.eq.s32.totalorder %s36, 0
      %p168 = por %p166, %p167
      %s170 = sadd.s32 %s169, 1
      %p173 = scmp.eq.s32.totalorder %s30, 1
      %p174 = scmp.ne.s32.totalorder %s169, %s171
      %p175 = scmp.eq.s32.totalorder %s30, 0
      %p176 = por %p174, %p175
      %p177 = scmp.ne.s32.totalorder %s169, %s171
      %p178 = scmp.eq.s32.totalorder %s35, 1
      %p179 = por %p177, %p178
      %p180 = scmp.ne.s32.totalorder %s171, %s172
      %p181 = scmp.eq.s32.totalorder %s35, 0
      %p182 = por %p180, %p181
      %p183 = scmp.ne.s32.totalorder %s171, %s172
      %p184 = scmp.eq.s32.totalorder %s36, 1
      %p185 = por %p183, %p184
      %p187 = scmp.ne.s32.totalorder %s172, %s186
      %p188 = scmp.eq.s32.totalorder %s36, 0
      %p189 = por %p187, %p188
      %s191 = sadd.s32 %s190, 1
      %p194 = scmp.eq.s32.totalorder %s30, 1
      %p195 = scmp.ne.s32.totalorder %s190, %s192
      %p196 = scmp.eq.s32.totalorder %s30, 0
      %p197 = por %p195, %p196
      %p198 = scmp.ne.s32.totalorder %s190, %s192
      %p199 = scmp.eq.s32.totalorder %s35, 1
      %p200 = por %p198, %p199
      %p201 = scmp.ne.s32.totalorder %s192, %s193
      %p202 = scmp.eq.s32.totalorder %s35, 0
      %p203 = por %p201, %p202
      %p204 = scmp.ne.s32.totalorder %s192, %s193
      %p205 = scmp.eq.s32.totalorder %s36, 1
      %p206 = por %p204, %p205
      %p208 = scmp.ne.s32.totalorder %s193, %s207
      %p209 = scmp.eq.s32.totalorder %s36, 0
      %p210 = por %p208, %p209
      %s212 = sadd.s32 %s211, 1
      %p215 = scmp.eq.s32.totalorder %s30, 1
      %p216 = scmp.ne.s32.totalorder %s211, %s213
      %p217 = scmp.eq.s32.totalorder %s30, 0
      %p218 = por %p216, %p217
      %p219 = scmp.ne.s32.totalorder %s211, %s213
      %p220 = scmp.eq.s32.totalorder %s35, 1
      %p221 = por %p219, %p220
      %p222 = scmp.ne.s32.totalorder %s213, %s214
      %p223 = scmp.eq.s32.totalorder %s35, 0
      %p224 = por %p222, %p223
      %p225 = scmp.ne.s32.totalorder %s213, %s214
      %p226 = scmp.eq.s32.totalorder %s36, 1
      %p227 = por %p225, %p226
      %p229 = scmp.ne.s32.totalorder %s214, %s228
      %p230 = scmp.eq.s32.totalorder %s36, 0
      %p231 = por %p229, %p230
      %s233 = sadd.s32 %s232, 1
      %p236 = scmp.eq.s32.totalorder %s30, 1
      %p237 = scmp.ne.s32.totalorder %s232, %s234
      %p238 = scmp.eq.s32.totalorder %s30, 0
      %p239 = por %p237, %p238
      %p240 = scmp.ne.s32.totalorder %s232, %s234
      %p241 = scmp.eq.s32.totalorder %s35, 1
      %p242 = por %p240, %p241
      %p243 = scmp.ne.s32.totalorder %s234, %s235
      %p244 = scmp.eq.s32.totalorder %s35, 0
      %p245 = por %p243, %p244
      %p246 = scmp.ne.s32.totalorder %s234, %s235
      %p247 = scmp.eq.s32.totalorder %s36, 1
      %p248 = por %p246, %p247
      %p250 = scmp.ne.s32.totalorder %s235, %s249
      %p251 = scmp.eq.s32.totalorder %s36, 0
      %p252 = por %p250, %p251
      %s254 = sadd.s32 %s253, 1
      %p257 = scmp.eq.s32.totalorder %s30, 1
      %p258 = scmp.ne.s32.totalorder %s253, %s255
      %p259 = scmp.eq.s32.totalorder %s30, 0
      %p260 = por %p258, %p259
      %p261 = scmp.ne.s32.totalorder %s253, %s255
      %p262 = scmp.eq.s32.totalorder %s35, 1
      %p263 = por %p261, %p262
      %p264 = scmp.ne.s32.totalorder %s255, %s256
      %p265 = scmp.eq.s32.totalorder %s35, 0
      %p266 = por %p264, %p265
      %p267 = scmp.ne.s32.totalorder %s255, %s256
      %p268 = scmp.eq.s32.totalorder %s36, 1
      %p269 = por %p267, %p268
      %p271 = scmp.ne.s32.totalorder %s256, %s270
      %p272 = scmp.eq.s32.totalorder %s36, 0
      %p273 = por %p271, %p272
      %s275 = sadd.s32 %s274, 1
      %p278 = scmp.eq.s32.totalorder %s30, 1
      %p279 = scmp.ne.s32.totalorder %s274, %s276
      %p280 = scmp.eq.s32.totalorder %s30, 0
      %p281 = por %p279, %p280
      %p282 = scmp.ne.s32.totalorder %s274, %s276
      %p283 = scmp.eq.s32.totalorder %s35, 1
      %p284 = por %p282, %p283
      %p285 = scmp.ne.s32.totalorder %s276, %s277
      %p286 = scmp.eq.s32.totalorder %s35, 0
      %p287 = por %p285, %p286
      %p288 = scmp.ne.s32.totalorder %s276, %s277
      %p289 = scmp.eq.s32.totalorder %s36, 1
      %p290 = por %p288, %p289
      %p292 = scmp.ne.s32.totalorder %s277, %s291
      %p293 = scmp.eq.s32.totalorder %s36, 0
      %p294 = por %p292, %p293
      %s295 = ssub.s32 %s30, %s37
      %p296 = scmp.eq.s32.totalorder %s295, 0
      %s298 = sadd.s32 %s297, 1
      %s299 = scalar_select %p296, %s297, %s298
      %p302 = pneg %p296
      %p303 = scmp.eq.s32.totalorder %s30, 1
      %p304 = por %p302, %p303
      %p305 = scmp.ne.s32.totalorder %s297, %s300
      %p306 = scmp.eq.s32.totalorder %s30, 0
      %p307 = por %p305, %p306
      %p308 = scmp.ne.s32.totalorder %s297, %s300
      %p309 = scmp.eq.s32.totalorder %s35, 1
      %p310 = por %p308, %p309
      %p311 = scmp.ne.s32.totalorder %s300, %s301
      %p312 = scmp.eq.s32.totalorder %s35, 0
      %p313 = por %p311, %p312
      %p314 = scmp.ne.s32.totalorder %s300, %s301
      %p315 = scmp.eq.s32.totalorder %s36, 1
      %p316 = por %p314, %p315
      %p318 = scmp.ne.s32.totalorder %s301, %s317
      %p319 = scmp.eq.s32.totalorder %s36, 0
      %p320 = por %p318, %p319
      %p321 = scmp.le.s32.totalorder 1, %s30
      %p322 = scmp.lt.s32.totalorder %s30, 3
      %p323 = pnand %p321, %p322
      %p324 = pneg %p323
      // Predicated region
      $region9: #{tpu_custom_call.1} parent=5 // pred_check
        _
      $region10: #{tpu_custom_call.1} parent=5 // pred_check_branch
        %326 = sbr.rel (%p323) target = $region12
      $region11: #{tpu_custom_call.1} parent=5 // pred_region
        %s327 = ssub.s32 %s30, 1
        // Predicated region
        $region13: #{tpu_custom_call.1} parent=11 // pred_check
          %p328 = pneg %p77
        $region14: #{tpu_custom_call.1} parent=11 // pred_check_branch
          %330 = sbr.rel (%p328) target = $region16
        $region15: #{tpu_custom_call.1} parent=11 // pred_region
          %s332 = ssub.s32 128, 128
          %333 = vsyncadd [#allocation6], %s332
          %s335 = sshll.u32 [#allocation5], 4
          %s336 = int_to_ptr.vmem [resolvable:$true] %s335
          %338 = dma.hbm_to_vmem [thread:$0]  %s1, 128, %s336, [#allocation6]
        $region16: #{tpu_custom_call.1} parent=11 // pred_fallthru
          _
        // Predicated region
        $region17: #{tpu_custom_call.1} parent=11 // pred_check
          %p339 = pneg %p98
        $region18: #{tpu_custom_call.1} parent=11 // pred_check_branch
          %341 = sbr.rel (%p339) target = $region20
        $region19: #{tpu_custom_call.1} parent=11 // pred_region
          %s343 = ssub.s32 128, 128
          %344 = vsyncadd [#allocation6], %s343
          %s346 = sshll.u32 [#allocation7], 4
          %s347 = int_to_ptr.vmem [resolvable:$true] %s346
          %349 = dma.hbm_to_vmem [thread:$0]  %s2, 128, %s347, [#allocation6]
        $region20: #{tpu_custom_call.1} parent=11 // pred_fallthru
          _
        // Predicated region
        $region21: #{tpu_custom_call.1} parent=11 // pred_check
          %p350 = pneg %p119
        $region22: #{tpu_custom_call.1} parent=11 // pred_check_branch
          %352 = sbr.rel (%p350) target = $region24
        $region23: #{tpu_custom_call.1} parent=11 // pred_region
          %s354 = ssub.s32 64, 64
          %355 = vsyncadd [#allocation9], %s354
          %s357 = sshll.u32 [#allocation8], 4
          %s358 = int_to_ptr.vmem [resolvable:$true] %s357
          %360 = dma.hbm_to_vmem [thread:$0]  %s3, 64, %s358, [#allocation9]
        $region24: #{tpu_custom_call.1} parent=11 // pred_fallthru
          _
        // Predicated region
        $region25: #{tpu_custom_call.1} parent=11 // pred_check
          %p361 = pneg %p140
        $region26: #{tpu_custom_call.1} parent=11 // pred_check_branch
          %363 = sbr.rel (%p361) target = $region28
        $region27: #{tpu_custom_call.1} parent=11 // pred_region
          %s365 = ssub.s32 128, 128
          %366 = vsyncadd [#allocation9], %s365
          %s368 = sshll.u32 [#allocation10], 4
          %s369 = int_to_ptr.vmem [resolvable:$true] %s368
          %371 = dma.hbm_to_vmem [thread:$0]  %s4, 128, %s369, [#allocation9]
        $region28: #{tpu_custom_call.1} parent=11 // pred_fallthru
          _
        // Predicated region
        $region29: #{tpu_custom_call.1} parent=11 // pred_check
          %p372 = pneg %p161
        $region30: #{tpu_custom_call.1} parent=11 // pred_check_branch
          %374 = sbr.rel (%p372) target = $region32
        $region31: #{tpu_custom_call.1} parent=11 // pred_region
          %s376 = ssub.s32 128, 128
          %377 = vsyncadd [#allocation12], %s376
          %s379 = sshll.u32 [#allocation11], 4
          %s380 = int_to_ptr.vmem [resolvable:$true] %s379
          %382 = dma.hbm_to_vmem [thread:$0]  %s5, 128, %s380, [#allocation12]
        $region32: #{tpu_custom_call.1} parent=11 // pred_fallthru
          _
        // Predicated region
        $region33: #{tpu_custom_call.1} parent=11 // pred_check
          %p383 = pneg %p182
        $region34: #{tpu_custom_call.1} parent=11 // pred_check_branch
          %385 = sbr.rel (%p383) target = $region36
        $region35: #{tpu_custom_call.1} parent=11 // pred_region
          %s387 = ssub.s32 128, 128
          %388 = vsyncadd [#allocation12], %s387
          %s390 = sshll.u32 [#allocation13], 4
          %s391 = int_to_ptr.vmem [resolvable:$true] %s390
          %393 = dma.hbm_to_vmem [thread:$0]  %s6, 128, %s391, [#allocation12]
        $region36: #{tpu_custom_call.1} parent=11 // pred_fallthru
          _
        // Predicated region
        $region37: #{tpu_custom_call.1} parent=11 // pred_check
          %p394 = pneg %p203
        $region38: #{tpu_custom_call.1} parent=11 // pred_check_branch
          %396 = sbr.rel (%p394) target = $region40
        $region39: #{tpu_custom_call.1} parent=11 // pred_region
          %s398 = ssub.s32 128, 128
          %399 = vsyncadd [#allocation15], %s398
          %s401 = sshll.u32 [#allocation14], 4
          %s402 = int_to_ptr.vmem [resolvable:$true] %s401
          %404 = dma.hbm_to_vmem [thread:$0]  %s7, 128, %s402, [#allocation15]
        $region40: #{tpu_custom_call.1} parent=11 // pred_fallthru
          _
        // Predicated region
        $region41: #{tpu_custom_call.1} parent=11 // pred_check
          %p405 = pneg %p224
        $region42: #{tpu_custom_call.1} parent=11 // pred_check_branch
          %407 = sbr.rel (%p405) target = $region44
        $region43: #{tpu_custom_call.1} parent=11 // pred_region
          %s409 = ssub.s32 128, 128
          %410 = vsyncadd [#allocation15], %s409
          %s412 = sshll.u32 [#allocation16], 4
          %s413 = int_to_ptr.vmem [resolvable:$true] %s412
          %415 = dma.hbm_to_vmem [thread:$0]  %s8, 128, %s413, [#allocation15]
        $region44: #{tpu_custom_call.1} parent=11 // pred_fallthru
          _
        // Predicated region
        $region45: #{tpu_custom_call.1} parent=11 // pred_check
          %p416 = pneg %p245
        $region46: #{tpu_custom_call.1} parent=11 // pred_check_branch
          %418 = sbr.rel (%p416) target = $region48
        $region47: #{tpu_custom_call.1} parent=11 // pred_region
          %s420 = ssub.s32 128, 128
          %421 = vsyncadd [#allocation18], %s420
          %s423 = sshll.u32 [#allocation17], 4
          %s424 = int_to_ptr.vmem [resolvable:$true] %s423
          %426 = dma.hbm_to_vmem [thread:$0]  %s9, 128, %s424, [#allocation18]
        $region48: #{tpu_custom_call.1} parent=11 // pred_fallthru
          _
        // Predicated region
        $region49: #{tpu_custom_call.1} parent=11 // pred_check
          %p427 = pneg %p266
        $region50: #{tpu_custom_call.1} parent=11 // pred_check_branch
          %429 = sbr.rel (%p427) target = $region52
        $region51: #{tpu_custom_call.1} parent=11 // pred_region
          %s431 = ssub.s32 64, 64
          %432 = vsyncadd [#allocation18], %s431
          %s434 = sshll.u32 [#allocation19], 4
          %s435 = int_to_ptr.vmem [resolvable:$true] %s434
          %437 = dma.hbm_to_vmem [thread:$0]  %s10, 64, %s435, [#allocation18]
        $region52: #{tpu_custom_call.1} parent=11 // pred_fallthru
          _
        // Predicated region
        $region53: #{tpu_custom_call.1} parent=11 // pred_check
          %p438 = pneg %p287
        $region54: #{tpu_custom_call.1} parent=11 // pred_check_branch
          %440 = sbr.rel (%p438) target = $region56
        $region55: #{tpu_custom_call.1} parent=11 // pred_region
          %s442 = ssub.s32 64, 64
          %443 = vsyncadd [#allocation21], %s442
          %s445 = sshll.u32 [#allocation20], 4
          %s446 = int_to_ptr.vmem [resolvable:$true] %s445
          %448 = dma.hbm_to_vmem [thread:$0]  %s11, 64, %s446, [#allocation21]
        $region56: #{tpu_custom_call.1} parent=11 // pred_fallthru
          _
      $region12: #{tpu_custom_call.1} parent=5 // pred_fallthru
        _
      %p449 = scmp.lt.s32.totalorder %s30, 2
      // Predicated region
      $region57: #{tpu_custom_call.1} parent=5 // pred_check
        %p450 = pneg %p449
      $region58: #{tpu_custom_call.1} parent=5 // pred_check_branch
        %452 = sbr.rel (%p450) target = $region60
      $region59: #{tpu_custom_call.1} parent=5 // pred_region
        // Predicated region
        $region61: #{tpu_custom_call.1} parent=59 // pred_check
          %p453 = pneg %p50
        $region62: #{tpu_custom_call.1} parent=59 // pred_check_branch
          %455 = sbr.rel (%p453) target = $region64
        $region63: #{tpu_custom_call.1} parent=59 // pred_region
          %s456 = sand.u32 %s40, 1
          %s457 = scalar_lea.sflag [#allocation3], %s456
          %s458 = sand.u32 %s40, 1
          %s459 = smul.addr %s458, 16
          %s460 = scalar_lea.vmem [#allocation2], %s459
          %s462 = ssub.s32 256, 256
          %463 = vsyncadd %s457, %s462
          %s464 = smul.addr %s30, 2
          %s465 = smul.addr %s464, 128
          %s466 = scalar_lea.hbm %s0, %s465
          %s468 = sshll.u32 %s460, 4
          %s469 = int_to_ptr.vmem [resolvable:$true] %s468
          %471 = dma.hbm_to_vmem [thread:$0]  %s466, 256, %s469, %s457
        $region64: #{tpu_custom_call.1} parent=59 // pred_fallthru
          _
      $region60: #{tpu_custom_call.1} parent=5 // pred_fallthru
        _
      %p472 = scmp.le.s32.totalorder 1, %s30
      %p473 = scmp.lt.s32.totalorder %s30, 3
      %p474 = pnand %p472, %p473
      %p475 = pneg %p474
      // Predicated region
      $region65: #{tpu_custom_call.1} parent=5 // pred_check
        _
      $region66: #{tpu_custom_call.1} parent=5 // pred_check_branch
        %477 = sbr.rel (%p474) target = $region68
      $region67: #{tpu_custom_call.1} parent=5 // pred_region
        %s478 = ssub.s32 %s30, 1
        %s479 = sand.u32 %s43, 1
        %s480 = scalar_lea.sflag [#allocation3], %s479
        %s481 = sand.u32 %s43, 1
        %s482 = smul.addr %s481, 16
        %s483 = scalar_lea.vmem [#allocation2], %s482
        // Predicated region
        $region69: #{tpu_custom_call.1} parent=67 // pred_check
          %p484 = pneg %p56
        $region70: #{tpu_custom_call.1} parent=67 // pred_check_branch
          %486 = sbr.rel (%p484) target = $region72
        $region71: #{tpu_custom_call.1} parent=67 // pred_region
          %487 = dma.done %s480, 256
        $region72: #{tpu_custom_call.1} parent=67 // pred_fallthru
          _
        // Predicated region
        $region73: #{tpu_custom_call.1} parent=67 // pred_check
          %p488 = pneg %p77
        $region74: #{tpu_custom_call.1} parent=67 // pred_check_branch
          %490 = sbr.rel (%p488) target = $region76
        $region75: #{tpu_custom_call.1} parent=67 // pred_region
          %491 = dma.done [#allocation6], 128
        $region76: #{tpu_custom_call.1} parent=67 // pred_fallthru
          _
        // Predicated region
        $region77: #{tpu_custom_call.1} parent=67 // pred_check
          %p492 = pneg %p98
        $region78: #{tpu_custom_call.1} parent=67 // pred_check_branch
          %494 = sbr.rel (%p492) target = $region80
        $region79: #{tpu_custom_call.1} parent=67 // pred_region
          %495 = dma.done [#allocation6], 128
        $region80: #{tpu_custom_call.1} parent=67 // pred_fallthru
          _
        // Predicated region
        $region81: #{tpu_custom_call.1} parent=67 // pred_check
          %p496 = pneg %p119
        $region82: #{tpu_custom_call.1} parent=67 // pred_check_branch
          %498 = sbr.rel (%p496) target = $region84
        $region83: #{tpu_custom_call.1} parent=67 // pred_region
          %499 = dma.done [#allocation9], 64
        $region84: #{tpu_custom_call.1} parent=67 // pred_fallthru
          _
        // Predicated region
        $region85: #{tpu_custom_call.1} parent=67 // pred_check
          %p500 = pneg %p140
        $region86: #{tpu_custom_call.1} parent=67 // pred_check_branch
          %502 = sbr.rel (%p500) target = $region88
        $region87: #{tpu_custom_call.1} parent=67 // pred_region
          %503 = dma.done [#allocation9], 128
        $region88: #{tpu_custom_call.1} parent=67 // pred_fallthru
          _
        // Predicated region
        $region89: #{tpu_custom_call.1} parent=67 // pred_check
          %p504 = pneg %p161
        $region90: #{tpu_custom_call.1} parent=67 // pred_check_branch
          %506 = sbr.rel (%p504) target = $region92
        $region91: #{tpu_custom_call.1} parent=67 // pred_region
          %507 = dma.done [#allocation12], 128
        $region92: #{tpu_custom_call.1} parent=67 // pred_fallthru
          _
        // Predicated region
        $region93: #{tpu_custom_call.1} parent=67 // pred_check
          %p508 = pneg %p182
        $region94: #{tpu_custom_call.1} parent=67 // pred_check_branch
          %510 = sbr.rel (%p508) target = $region96
        $region95: #{tpu_custom_call.1} parent=67 // pred_region
          %511 = dma.done [#allocation12], 128
        $region96: #{tpu_custom_call.1} parent=67 // pred_fallthru
          _
        // Predicated region
        $region97: #{tpu_custom_call.1} parent=67 // pred_check
          %p512 = pneg %p203
        $region98: #{tpu_custom_call.1} parent=67 // pred_check_branch
          %514 = sbr.rel (%p512) target = $region100
        $region99: #{tpu_custom_call.1} parent=67 // pred_region
          %515 = dma.done [#allocation15], 128
        $region100: #{tpu_custom_call.1} parent=67 // pred_fallthru
          _
        // Predicated region
        $region101: #{tpu_custom_call.1} parent=67 // pred_check
          %p516 = pneg %p224
        $region102: #{tpu_custom_call.1} parent=67 // pred_check_branch
          %518 = sbr.rel (%p516) target = $region104
        $region103: #{tpu_custom_call.1} parent=67 // pred_region
          %519 = dma.done [#allocation15], 128
        $region104: #{tpu_custom_call.1} parent=67 // pred_fallthru
          _
        // Predicated region
        $region105: #{tpu_custom_call.1} parent=67 // pred_check
          %p520 = pneg %p245
        $region106: #{tpu_custom_call.1} parent=67 // pred_check_branch
          %522 = sbr.rel (%p520) target = $region108
        $region107: #{tpu_custom_call.1} parent=67 // pred_region
          %523 = dma.done [#allocation18], 128
        $region108: #{tpu_custom_call.1} parent=67 // pred_fallthru
          _
        // Predicated region
        $region109: #{tpu_custom_call.1} parent=67 // pred_check
          %p524 = pneg %p266
        $region110: #{tpu_custom_call.1} parent=67 // pred_check_branch
          %526 = sbr.rel (%p524) target = $region112
        $region111: #{tpu_custom_call.1} parent=67 // pred_region
          %527 = dma.done [#allocation18], 64
        $region112: #{tpu_custom_call.1} parent=67 // pred_fallthru
          _
        // Predicated region
        $region113: #{tpu_custom_call.1} parent=67 // pred_check
          %p528 = pneg %p287
        $region114: #{tpu_custom_call.1} parent=67 // pred_check_branch
          %530 = sbr.rel (%p528) target = $region116
        $region115: #{tpu_custom_call.1} parent=67 // pred_region
          %531 = dma.done [#allocation21], 64
        $region116: #{tpu_custom_call.1} parent=67 // pred_fallthru
          _
        %s532 = sand.u32 %s43, 1
        %s533 = scalar_lea.sflag [#allocation3], %s532
        %s534 = sand.u32 %s43, 1
        %s535 = smul.addr %s534, 16
        %s536 = scalar_lea.vmem [#allocation2], %s535
        %p537 = pneg %p56
        %p538 = pneg %p53
        %p539 = pneg %p77
        %p540 = pneg %p74
        %p541 = pneg %p98
        %p542 = pneg %p95
        %p543 = pneg %p119
        %p544 = pneg %p116
        %p545 = pneg %p140
        %p546 = pneg %p137
        %p547 = pneg %p161
        %p548 = pneg %p158
        %p549 = pneg %p182
        %p550 = pneg %p179
        %p551 = pneg %p203
        %p552 = pneg %p200
        %p553 = pneg %p224
        %p554 = pneg %p221
        %p555 = pneg %p245
        %p556 = pneg %p242
        %p557 = pneg %p266
        %p558 = pneg %p263
        %p559 = pneg %p287
        %p560 = pneg %p284
        %p561 = pneg %p313
        %p562 = pneg %p310
        %s563 = sand.u32 %s300, 1
        %s564 = scalar_lea.sflag [#allocation4], %s563
        %s565 = sand.u32 %s300, 1
        %s566 = smul.addr %s565, 16
        %s567 = scalar_lea.vmem [#allocation22], %s566
        %v569 = vld [vmem:[%s483] sm:$0xff]
        %v570 = vld [vmem:[%s483 + $0x8] sm:$0xff]
        %v571 = vld [vmem:[#allocation5] sm:$0xff]
        %573 = vset.pattern.permute.xlu0 0
        %574 = vperm.xlu0 %573, %v571
        %v575 = vpop.permute.xlu0 %574
        %v577 = vmul.f32 %v569, %v575
        %v578 = vmul.f32 %v570, %v575
        %v579 = vld [vmem:[#allocation7] sm:$0xff]
        %581 = vset.pattern.permute.xlu0 0
        %582 = vperm.xlu0 %581, %v579
        %v583 = vpop.permute.xlu0 %582
        %v585 = vadd.f32 %v577, %v583
        %v586 = vadd.f32 %v578, %v583
        %v587 = vmax.f32 %v585, 0.0
        %v588 = vmax.f32 %v586, 0.0
        %v589 = vpack.c.bf16 %v587, %v587
        %v590 = vpack.c.bf16 %v588, %v588
        %v591 = vld [vmem:[#allocation8] sm:$0xf]
        %vm592 = vcmask 64512
        %v594 = vsel %vm592, %v591, 0
        %vm596 = vcmask 1043456
        %v598 = vsel %vm596, %v589, 0
        %v601 = vsel %vm596, %v590, 0
        %603 = vmatprep.subr.bf16.mxu0 %v601
        %604 = vmatpush1.bf16.msra.mxu0 %v598
        %605 = vmatprep.subr.bf16.mxu0 0
        %606 = vmatpush1.bf16.msra.mxu0 0
        %607 = vmatprep.subr.bf16.mxu0 0
        %608 = vmatpush1.bf16.msra.mxu0 0
        %609 = vmatprep.subr.bf16.mxu0 0
        %610 = vmatpush1.bf16.msra.mxu0 0
        %611 = vmatprep.subr.bf16.mxu0 0
        %612 = vmatpush1.bf16.msra.mxu0 0
        %613 = vmatprep.subr.bf16.mxu0 0
        %614 = vmatpush1.bf16.msra.mxu0 0
        %615 = vmatprep.subr.bf16.mxu0 0
        %616 = vmatpush1.bf16.msra.mxu0 0
        %617 = vmatprep.subr.bf16.mxu0 0
        %618 = vmatpush1.bf16.msra.mxu0 0
        %619 = vmatprep.subr.bf16.mxu0 0
        %620 = vmatpush1.bf16.msra.mxu0 0
        %621 = vmatprep.subr.bf16.mxu0 0
        %622 = vmatpush1.bf16.msra.mxu0 0
        %623 = vmatprep.subr.bf16.mxu0 0
        %624 = vmatpush1.bf16.msra.mxu0 0
        %625 = vmatprep.subr.bf16.mxu0 0
        %626 = vmatpush1.bf16.msra.mxu0 0
        %627 = vmatprep.subr.bf16.mxu0 0
        %628 = vmatpush1.bf16.msra.mxu0 0
        %629 = vmatprep.subr.bf16.mxu0 0
        %630 = vmatpush1.bf16.msra.mxu0 0
        %631 = vmatprep.subr.bf16.mxu0 0
        %632 = vmatpush1.bf16.msra.mxu0 0
        %633 = vmatprep.subr.bf16.mxu0 0
        %634 = vmatpush1.bf16.msra.mxu0 0
        %635 = vmatprep.mubr.bf16.mxu0 0
        %636 = vmatmul.mubr.bf16.gmra.mrb[0].mxu0 %v594
        %v637 = vpop.f32.mrb[0].mxu0
        %v638 = vadd.f32 0.0, %v637
        %v639 = vpop.f32.mrb[0].mxu0
        %v640 = vadd.f32 0.0, %v639
        %v641 = vpop.f32.mrb[0].mxu0
        %v642 = vpop.f32.mrb[0].mxu0
        %643 = vdwg.mxu0
        %v644 = vmax.f32 %v638, 0.0
        %v645 = vmax.f32 %v640, 0.0
        %v646 = vld [vmem:[#allocation10] sm:$0xff]
        %648 = vset.pattern.permute.xlu0 0
        %649 = vperm.xlu0 %648, %v646
        %v650 = vpop.permute.xlu0 %649
        %v652 = vmul.f32 %v644, %v650
        %v653 = vmul.f32 %v645, %v650
        %v654 = vld [vmem:[#allocation11] sm:$0xff]
        %656 = vset.pattern.permute.xlu0 0
        %657 = vperm.xlu0 %656, %v654
        %v658 = vpop.permute.xlu0 %657
        %v660 = vadd.f32 %v652, %v658
        %v661 = vadd.f32 %v653, %v658
        %v662 = vld [vmem:[#allocation13] sm:$0xff]
        %v663 = vld [vmem:[#allocation16] sm:$0x77]
        %664 = vrot.lane.b32.xlu0 %v660, 16
        %v665 = vpop.permute.xlu0 %664
        %666 = vrot.lane.b32.xlu0 %v661, 16
        %v667 = vpop.permute.xlu0 %666
        %v668 = vlaneseq
        %v669 = vand.u32 %v668, 127
        %vm670 = vcmp.lt.s32.totalorder %v669, 16
        %v671 = vsel %vm670, %v665, %v667
        %v672 = vsel %vm670, %v667, %v665
        %v674 = vlaneseq
        %v675 = vshrl.u32 %v674, 7
        %v676 = vsub.s32 0, %v675
        %v677 = vrot.slane %v663, %v676
        %v678 = vlaneseq
        %v679 = vshrl.u32 %v678, 7
        %v680 = vsub.s32 4, %v679
        %v681 = vrot.slane %v663, %v680
        %v684 = vlaneseq
        %v685 = vshrl.u32 %v684, 7
        %v686 = vsub.s32 0, %v685
        %v687 = vrot.slane %v677, %v686
        %v688 = vlaneseq
        %v689 = vshrl.u32 %v688, 7
        %v690 = vsub.s32 0, %v689
        %v691 = vrot.slane %v681, %v690
        %v692 = vmul.f32 %v687, %v672
        %v693 = vmul.f32 %v691, %v671
        %695 = vset.pattern.permute.xlu0 0
        %696 = vperm.xlu0 %695, %v662
        %v697 = vpop.permute.xlu0 %696
        %v699 = vmul.f32 %v697, %v692
        %v700 = vmul.f32 %v697, %v693
        %701 = vset.pattern.permute.xlu0 1
        %702 = vperm.xlu0 %701, %v662
        %v703 = vpop.permute.xlu0 %702
        %v705 = vmul.f32 %v703, %v660
        %v706 = vmul.f32 %v703, %v661
        %v707 = vadd.f32 %v699, %v705
        %v708 = vadd.f32 %v700, %v706
        %709 = vrot.lane.b32.xlu0 %v660, 112
        %v710 = vpop.permute.xlu0 %709
        %711 = vrot.lane.b32.xlu0 %v661, 112
        %v712 = vpop.permute.xlu0 %711
        %vm713 = vcmp.lt.s32.totalorder %v669, 112
        %v714 = vsel %vm713, %v710, %v712
        %v715 = vsel %vm713, %v712, %v710
        %v716 = vlaneseq
        %v717 = vshrl.u32 %v716, 7
        %v718 = vsub.s32 2, %v717
        %v719 = vrot.slane %v663, %v718
        %v720 = vlaneseq
        %v721 = vshrl.u32 %v720, 7
        %v722 = vsub.s32 6, %v721
        %v723 = vrot.slane %v663, %v722
        %v726 = vlaneseq
        %v727 = vshrl.u32 %v726, 7
        %v728 = vsub.s32 2, %v727
        %v729 = vrot.slane %v719, %v728
        %v730 = vlaneseq
        %v731 = vshrl.u32 %v730, 7
        %v732 = vsub.s32 2, %v731
        %v733 = vrot.slane %v723, %v732
        %v734 = vmul.f32 %v729, %v714
        %v735 = vmul.f32 %v733, %v715
        %736 = vset.pattern.permute.xlu0 2
        %737 = vperm.xlu0 %736, %v662
        %v738 = vpop.permute.xlu0 %737
        %v740 = vmul.f32 %v738, %v734
        %v741 = vmul.f32 %v738, %v735
        %v742 = vadd.f32 %v707, %v740
        %v743 = vadd.f32 %v708, %v741
        %v744 = vld [vmem:[#allocation14] sm:$0xff]
        %v745 = vld [vmem:[#allocation17] sm:$0x77]
        %746 = vrot.lane.b32.xlu0 %v742, 1
        %v747 = vpop.permute.xlu0 %746
        %748 = vrot.lane.b32.xlu0 %v743, 1
        %v749 = vpop.permute.xlu0 %748
        %vm750 = vcmp.lt.s32.totalorder %v669, 1
        %v751 = vsel %vm750, %v747, %v749
        %v752 = vsel %vm750, %v749, %v747
        %v754 = vlaneseq
        %v755 = vshrl.u32 %v754, 7
        %v756 = vsub.s32 0, %v755
        %v757 = vrot.slane %v745, %v756
        %v758 = vlaneseq
        %v759 = vshrl.u32 %v758, 7
        %v760 = vsub.s32 4, %v759
        %v761 = vrot.slane %v745, %v760
        %v764 = vlaneseq
        %v765 = vshrl.u32 %v764, 7
        %v766 = vsub.s32 0, %v765
        %v767 = vrot.slane %v757, %v766
        %v768 = vlaneseq
        %v769 = vshrl.u32 %v768, 7
        %v770 = vsub.s32 0, %v769
        %v771 = vrot.slane %v761, %v770
        %v772 = vmul.f32 %v767, %v752
        %v773 = vmul.f32 %v771, %v751
        %775 = vset.pattern.permute.xlu0 0
        %776 = vperm.xlu0 %775, %v744
        %v777 = vpop.permute.xlu0 %776
        %v779 = vmul.f32 %v777, %v772
        %v780 = vmul.f32 %v777, %v773
        %781 = vset.pattern.permute.xlu0 1
        %782 = vperm.xlu0 %781, %v744
        %v783 = vpop.permute.xlu0 %782
        %v785 = vmul.f32 %v783, %v742
        %v786 = vmul.f32 %v783, %v743
        %v787 = vadd.f32 %v779, %v785
        %v788 = vadd.f32 %v780, %v786
        %789 = vrot.lane.b32.xlu0 %v742, 127
        %v790 = vpop.permute.xlu0 %789
        %791 = vrot.lane.b32.xlu0 %v743, 127
        %v792 = vpop.permute.xlu0 %791
        %vm793 = vcmp.lt.s32.totalorder %v669, 127
        %v794 = vsel %vm793, %v790, %v792
        %v795 = vsel %vm793, %v792, %v790
        %v796 = vlaneseq
        %v797 = vshrl.u32 %v796, 7
        %v798 = vsub.s32 2, %v797
        %v799 = vrot.slane %v745, %v798
        %v800 = vlaneseq
        %v801 = vshrl.u32 %v800, 7
        %v802 = vsub.s32 6, %v801
        %v803 = vrot.slane %v745, %v802
        %v806 = vlaneseq
        %v807 = vshrl.u32 %v806, 7
        %v808 = vsub.s32 2, %v807
        %v809 = vrot.slane %v799, %v808
        %v810 = vlaneseq
        %v811 = vshrl.u32 %v810, 7
        %v812 = vsub.s32 2, %v811
        %v813 = vrot.slane %v803, %v812
        %v814 = vmul.f32 %v809, %v794
        %v815 = vmul.f32 %v813, %v795
        %816 = vset.pattern.permute.xlu0 2
        %817 = vperm.xlu0 %816, %v744
        %v818 = vpop.permute.xlu0 %817
        %v820 = vmul.f32 %v818, %v814
        %v821 = vmul.f32 %v818, %v815
        %v822 = vadd.f32 %v787, %v820
        %v823 = vadd.f32 %v788, %v821
        %v824 = vpack.c.bf16 %v822, %v822
        %v825 = vpack.c.bf16 %v823, %v823
        %v826 = vld [vmem:[#allocation19] sm:$0xf]
        %v827 = vld [vmem:[#allocation20] sm:$0xf]
        %v828 = vpack.c.bf16 %v569, %v569
        %v829 = vpack.c.bf16 %v570, %v570
        %v831 = vsel %vm592, %v827, 0
        %v834 = vsel %vm596, %v828, 0
        %v837 = vsel %vm596, %v829, 0
        %839 = vmatprep.subr.bf16.mxu0 %v837
        %840 = vmatpush1.bf16.msra.mxu0 %v834
        %841 = vmatprep.subr.bf16.mxu0 0
        %842 = vmatpush1.bf16.msra.mxu0 0
        %843 = vmatprep.subr.bf16.mxu0 0
        %844 = vmatpush1.bf16.msra.mxu0 0
        %845 = vmatprep.subr.bf16.mxu0 0
        %846 = vmatpush1.bf16.msra.mxu0 0
        %847 = vmatprep.subr.bf16.mxu0 0
        %848 = vmatpush1.bf16.msra.mxu0 0
        %849 = vmatprep.subr.bf16.mxu0 0
        %850 = vmatpush1.bf16.msra.mxu0 0
        %851 = vmatprep.subr.bf16.mxu0 0
        %852 = vmatpush1.bf16.msra.mxu0 0
        %853 = vmatprep.subr.bf16.mxu0 0
        %854 = vmatpush1.bf16.msra.mxu0 0
        %855 = vmatprep.subr.bf16.mxu0 0
        %856 = vmatpush1.bf16.msra.mxu0 0
        %857 = vmatprep.subr.bf16.mxu0 0
        %858 = vmatpush1.bf16.msra.mxu0 0
        %859 = vmatprep.subr.bf16.mxu0 0
        %860 = vmatpush1.bf16.msra.mxu0 0
        %861 = vmatprep.subr.bf16.mxu0 0
        %862 = vmatpush1.bf16.msra.mxu0 0
        %863 = vmatprep.subr.bf16.mxu0 0
        %864 = vmatpush1.bf16.msra.mxu0 0
        %865 = vmatprep.subr.bf16.mxu0 0
        %866 = vmatpush1.bf16.msra.mxu0 0
        %867 = vmatprep.subr.bf16.mxu0 0
        %868 = vmatpush1.bf16.msra.mxu0 0
        %869 = vmatprep.subr.bf16.mxu0 0
        %870 = vmatpush1.bf16.msra.mxu0 0
        %871 = vmatprep.mubr.bf16.mxu0 0
        %872 = vmatmul.mubr.bf16.gmra.mrb[0].mxu0 %v831
        %v873 = vpop.f32.mrb[0].mxu0
        %v874 = vadd.f32 0.0, %v873
        %v875 = vpop.f32.mrb[0].mxu0
        %v876 = vadd.f32 0.0, %v875
        %v877 = vpop.f32.mrb[0].mxu0
        %v878 = vpop.f32.mrb[0].mxu0
        %879 = vdwg.mxu0
        %v881 = vsel %vm592, %v826, 0
        %v884 = vsel %vm596, %v824, 0
        %v887 = vsel %vm596, %v825, 0
        %889 = vmatprep.subr.bf16.mxu0 %v887
        %890 = vmatpush1.bf16.msra.mxu0 %v884
        %891 = vmatprep.subr.bf16.mxu0 0
        %892 = vmatpush1.bf16.msra.mxu0 0
        %893 = vmatprep.subr.bf16.mxu0 0
        %894 = vmatpush1.bf16.msra.mxu0 0
        %895 = vmatprep.subr.bf16.mxu0 0
        %896 = vmatpush1.bf16.msra.mxu0 0
        %897 = vmatprep.subr.bf16.mxu0 0
        %898 = vmatpush1.bf16.msra.mxu0 0
        %899 = vmatprep.subr.bf16.mxu0 0
        %900 = vmatpush1.bf16.msra.mxu0 0
        %901 = vmatprep.subr.bf16.mxu0 0
        %902 = vmatpush1.bf16.msra.mxu0 0
        %903 = vmatprep.subr.bf16.mxu0 0
        %904 = vmatpush1.bf16.msra.mxu0 0
        %905 = vmatprep.subr.bf16.mxu0 0
        %906 = vmatpush1.bf16.msra.mxu0 0
        %907 = vmatprep.subr.bf16.mxu0 0
        %908 = vmatpush1.bf16.msra.mxu0 0
        %909 = vmatprep.subr.bf16.mxu0 0
        %910 = vmatpush1.bf16.msra.mxu0 0
        %911 = vmatprep.subr.bf16.mxu0 0
        %912 = vmatpush1.bf16.msra.mxu0 0
        %913 = vmatprep.subr.bf16.mxu0 0
        %914 = vmatpush1.bf16.msra.mxu0 0
        %915 = vmatprep.subr.bf16.mxu0 0
        %916 = vmatpush1.bf16.msra.mxu0 0
        %917 = vmatprep.subr.bf16.mxu0 0
        %918 = vmatpush1.bf16.msra.mxu0 0
        %919 = vmatprep.subr.bf16.mxu0 0
        %920 = vmatpush1.bf16.msra.mxu0 0
        %921 = vmatprep.mubr.bf16.mxu0 0
        %922 = vmatmul.mubr.bf16.gmra.mrb[0].mxu0 %v881
        %v923 = vpop.f32.mrb[0].mxu0
        %v924 = vadd.f32 %v874, %v923
        %v925 = vpop.f32.mrb[0].mxu0
        %v926 = vadd.f32 %v876, %v925
        %v927 = vpop.f32.mrb[0].mxu0
        %v928 = vpop.f32.mrb[0].mxu0
        %929 = vdwg.mxu0
        %930 = vst [vmem:[%s567] sm:$0xff] %v924
        %931 = vst [vmem:[%s567 + $0x8] sm:$0xff] %v926
        %s932 = sand.u32 %s300, 1
        %s933 = scalar_lea.sflag [#allocation4], %s932
        %s934 = sand.u32 %s300, 1
        %s935 = smul.addr %s934, 16
        %s936 = scalar_lea.vmem [#allocation22], %s935
        // Predicated region
        $region117: #{tpu_custom_call.1} parent=67 // pred_check
          %p937 = pneg %p310
        $region118: #{tpu_custom_call.1} parent=67 // pred_check_branch
          %939 = sbr.rel (%p937) target = $region120
        $region119: #{tpu_custom_call.1} parent=67 // pred_region
          %s941 = ssub.s32 256, 256
          %942 = vsyncadd %s933, %s941
          %s943 = smul.addr %s35, 2
          %s944 = smul.addr %s943, 128
          %s945 = scalar_lea.hbm %s12, %s944
          %s947 = sshll.u32 %s936, 4
          %s948 = int_to_ptr.vmem [resolvable:$true] %s947
          %950 = dma.vmem_to_hbm [thread:$0]  %s948, 256, %s945, %s933
        $region120: #{tpu_custom_call.1} parent=67 // pred_fallthru
          _
      $region68: #{tpu_custom_call.1} parent=5 // pred_fallthru
        _
      %p951 = scmp.le.s32.totalorder 2, %s30
      // Predicated region
      $region121: #{tpu_custom_call.1} parent=5 // pred_check
        %p952 = pneg %p951
      $region122: #{tpu_custom_call.1} parent=5 // pred_check_branch
        %954 = sbr.rel (%p952) target = $region124
      $region123: #{tpu_custom_call.1} parent=5 // pred_region
        %s955 = ssub.s32 %s30, 2
        // Predicated region
        $region125: #{tpu_custom_call.1} parent=123 // pred_check
          %p956 = pneg %p316
        $region126: #{tpu_custom_call.1} parent=123 // pred_check_branch
          %958 = sbr.rel (%p956) target = $region128
        $region127: #{tpu_custom_call.1} parent=123 // pred_region
          %s959 = sand.u32 %s301, 1
          %s960 = scalar_lea.sflag [#allocation4], %s959
          %s961 = sand.u32 %s301, 1
          %s962 = smul.addr %s961, 16
          %s963 = scalar_lea.vmem [#allocation22], %s962
          %964 = dma.done %s960, 256
        $region128: #{tpu_custom_call.1} parent=123 // pred_fallthru
          _
      $region124: #{tpu_custom_call.1} parent=5 // pred_fallthru
        _
    $region6: #{tpu_custom_call.1} parent=1 // loop_footer
      %s34 = sadd.s32 1, %s30
    $region7: #{tpu_custom_call.1} parent=1 // loop_footer_branch
      %29 = sbr.rel target = $region3
    $region8: #{tpu_custom_call.1} parent=1 // loop_exit
      _
    %965 = vsyncpa [#allocation3], 1
    %s966 = scalar_lea.sflag [#allocation3], 1
    %967 = vsyncpa %s966, 1
    %968 = vsyncpa [#allocation6], 1
    %969 = vsyncpa [#allocation9], 1
    %970 = vsyncpa [#allocation12], 1
    %971 = vsyncpa [#allocation15], 1
    %972 = vsyncpa [#allocation18], 1
    %973 = vsyncpa [#allocation21], 1
    %974 = vsyncpa [#allocation4], 1
    %s975 = scalar_lea.sflag [#allocation4], 1
    %976 = vsyncpa %s975, 1

</llo_original>
